<compile_context>
chip_gen: v5e
topology: v5e:2x2
jax: 0.10.0
libtpu: 0.0.40
codegen_flags: <defaults>
</compile_context>

<pallas_src>
import functools

import jax
import jax.numpy as jnp
from jax.experimental import pallas as pl
from jax.experimental.pallas import tpu as pltpu

_LANE = 128
_SUBLANE = 8


def _round_up(x, m):
    return (x + m - 1) // m * m


def _ae_kernel(x_ref,
               w1_ref, b1_ref,
               w2_ref, b2_ref,
               w3_ref, b3_ref,
               w4_ref, b4_ref,
               w5_ref, b5_ref,
               o_ref):
    # x_ref: (TM, L) bf16.  w_i: bf16 (VMEM-resident).  b_i: (1, H) f32.
    h = x_ref[...]  # bf16 MXU operand
    for w_ref, b_ref in ((w1_ref, b1_ref), (w2_ref, b2_ref),
                         (w3_ref, b3_ref), (w4_ref, b4_ref)):
        acc = jnp.dot(h, w_ref[...], preferred_element_type=jnp.float32)
        acc = acc + b_ref[...]                      # f32 bias add (VPU)
        # sigmoid(z) = 0.5*tanh(0.5*z) + 0.5  -> one EUP op instead of exp+recip.
        # TODO(synk): on v6e/v7x cast to bf16 before tanh for the bf16 EUP path.
        h = (jnp.tanh(acc * 0.5) * 0.5 + 0.5).astype(jnp.bfloat16)
    out = jnp.dot(h, w5_ref[...], preferred_element_type=jnp.float32) + b5_ref[...]
    o_ref[...] = out.astype(o_ref.dtype)            # lane-dense (P padded to 128k)


@functools.partial(jax.jit, static_argnames=("pred_len", "row_tile"))
def autoencoder_forward(enc_x, kparams, *, pred_len, row_tile=1024):
    """enc_x: (B, seq_len, C) float32 -> (B, pred_len, C) float32.

    kparams: bf16 / zero-padded parameter tuple from pack_params().
    """
    B, L, C = enc_x.shape
    w1, b1, w2, b2, w3, b3, w4, b4, w5, b5 = kparams
    Hp = w2.shape[0]            # hidden padded to multiple of 128 (300 -> 384)
    Pp = w5.shape[1]            # pred_len padded to multiple of 128 (lane-dense)

    M = B * C
    # permute(0,2,1) then flatten (B, C, L) -> (B*C, L); cast to bf16 (MXU operand).
    # TODO(synk): fuse this transpose+cast into the pallas_call input DMA.
    x2d = jnp.transpose(enc_x, (0, 2, 1)).reshape(M, L).astype(jnp.bfloat16)

    # Row tile: multiple of 8 sublanes, capped by the row count; split into >= 2
    # grid steps when there is enough work so v7x can shard rows over its 2 TCs.
    tm = min(row_tile, _round_up(M, _SUBLANE))
    if (M + tm - 1) // tm < 2 and M > 2 * _SUBLANE:
        tm = _round_up((M + 1) // 2, _SUBLANE)
    m_pad = _round_up(M, tm)
    if m_pad != M:
        x2d = jnp.pad(x2d, ((0, m_pad - M), (0, 0)))

    grid = (m_pad // tm,)
    resident = lambda i: (0, 0)   # constant index_map -> weights stay VMEM-resident
    weight_ops = (w1, b1, w2, b2, w3, b3, w4, b4, w5, b5)
    in_specs = [pl.BlockSpec((tm, L), lambda i: (i, 0))] + [
        pl.BlockSpec(w.shape, resident) for w in weight_ops
    ]

    # Advisory cost estimate so XLA schedules the neighboring transpose/cast ops.
    flops = 2 * M * (L * Hp + 3 * Hp * Hp + Hp * Pp)
    transcendentals = 4 * M * Hp
    bytes_accessed = (M * L * 2 + M * Pp * 4
                      + 2 * (L * Hp + 3 * Hp * Hp + Hp * Pp)
                      + 4 * (4 * Hp + Pp))

    out2d = pl.pallas_call(
        _ae_kernel,
        out_shape=jax.ShapeDtypeStruct((m_pad, Pp), jnp.float32),
        grid=grid,
        in_specs=in_specs,
        out_specs=pl.BlockSpec((tm, Pp), lambda i: (i, 0)),
        compiler_params=pltpu.CompilerParams(
            dimension_semantics=("parallel",),      # shard row tiles over v7x's 2 TCs
            vmem_limit_bytes=32 * 1024 * 1024),     # cover v5e's 16 MiB scoped default
        cost_estimate=pl.CostEstimate(
            flops=flops,
            transcendentals=transcendentals,
            bytes_accessed=bytes_accessed),
    )(x2d, *weight_ops)

    out2d = out2d[:M, :pred_len]
    # (B*C, P) -> (B, C, P) -> permute(0,2,1) -> (B, P, C)
    return jnp.transpose(out2d.reshape(B, C, pred_len), (0, 2, 1))


# ---------------- parameter construction (PyTorch-equivalent init) ----------------

def _init_linear(key, fan_in, fan_out):
    # PyTorch nn.Linear default init: U(-1/sqrt(fan_in), 1/sqrt(fan_in))
    kw, kb = jax.random.split(key)
    bound = 1.0 / jnp.sqrt(jnp.float32(fan_in))
    # stored as (in, out) so the kernel does x @ w  (== PyTorch x @ W.T)
    w = jax.random.uniform(kw, (fan_in, fan_out), jnp.float32, -bound, bound)
    b = jax.random.uniform(kb, (1, fan_out), jnp.float32, -bound, bound)
    return w, b


def make_params(key, seq_len, pred_len, hidden_size=300):
    """Unpadded f32 parameters (reference semantics)."""
    keys = jax.random.split(key, 5)
    w1, b1 = _init_linear(keys[0], seq_len, hidden_size)
    w2, b2 = _init_linear(keys[1], hidden_size, hidden_size)
    w3, b3 = _init_linear(keys[2], hidden_size, hidden_size)
    w4, b4 = _init_linear(keys[3], hidden_size, hidden_size)
    w5, b5 = _init_linear(keys[4], hidden_size, pred_len)
    return (w1, b1, w2, b2, w3, b3, w4, b4, w5, b5)


def pack_params(params, hidden_size):
    """Pad hidden and pred dims to multiples of 128; cast matmul operands to bf16.

    Zero-padding rule: extra output columns of w_k / b_k are zero, and the
    corresponding extra input ROWS of w_{k+1} (and w5) are zero, so the
    sigmoid(0)=0.5 on padded units contributes nothing downstream.  Extra output
    columns of w5 / b5 are zero and are sliced off in the wrapper.
    """
    w1, b1, w2, b2, w3, b3, w4, b4, w5, b5 = params
    dp = _round_up(hidden_size, _LANE) - hidden_size      # 300 -> 384 : dp = 84
    pred_len = w5.shape[1]
    dq = _round_up(pred_len, _LANE) - pred_len            # lane-dense output stores

    w1p = jnp.pad(w1, ((0, 0), (0, dp)))
    b1p = jnp.pad(b1, ((0, 0), (0, dp)))
    w2p = jnp.pad(w2, ((0, dp), (0, dp)))
    b2p = jnp.pad(b2, ((0, 0), (0, dp)))
    w3p = jnp.pad(w3, ((0, dp), (0, dp)))
    b3p = jnp.pad(b3, ((0, 0), (0, dp)))
    w4p = jnp.pad(w4, ((0, dp), (0, dp)))
    b4p = jnp.pad(b4, ((0, 0), (0, dp)))
    w5p = jnp.pad(w5, ((0, dp), (0, dq)))
    b5p = jnp.pad(b5, ((0, 0), (0, dq)))

    bf = lambda a: a.astype(jnp.bfloat16)
    # Weights -> bf16 (MXU operands); biases stay f32 (VPU add).
    return (bf(w1p), b1p, bf(w2p), b2p, bf(w3p), b3p, bf(w4p), b4p, bf(w5p), b5p)


def _reference_forward(enc_x, params):
    w1, b1, w2, b2, w3, b3, w4, b4, w5, b5 = params
    x = jnp.transpose(enc_x, (0, 2, 1))
    x = jax.nn.sigmoid(x @ w1 + b1)
    x = jax.nn.sigmoid(x @ w2 + b2)
    x = jax.nn.sigmoid(x @ w3 + b3)
    x = jax.nn.sigmoid(x @ w4 + b4)
    x = x @ w5 + b5
    return jnp.transpose(x, (0, 2, 1))


if __name__ == "__main__":
    # Small, forward-consistent shapes: batch=2, channels(features)=4,
    # seq_len=16, pred_len=8, hidden=300 (module default).
    B, L, C = 2, 16, 4
    PRED, HIDDEN = 8, 300

    key = jax.random.PRNGKey(0)
    k_x, k_p = jax.random.split(key)

    enc_x = jax.random.normal(k_x, (B, L, C), jnp.float32)
    # enc_mark / y / y_mark are unused by the forward pass.
    params = make_params(k_p, L, PRED, HIDDEN)          # f32 reference params
    kparams = pack_params(params, HIDDEN)               # padded + bf16 kernel params

    out = autoencoder_forward(enc_x, kparams, pred_len=PRED)
    out = jax.block_until_ready(out)

    ref = _reference_forward(enc_x, params)
    assert out.shape == (B, PRED, C), out.shape
    # bf16 MXU operands with f32 accumulation -> looser tolerance than pure f32.
    assert jnp.allclose(out, ref, atol=2e-2, rtol=2e-2), "mismatch vs reference"

    print("KERNEL_OK")
</pallas_src>

<mosaic_0001>
module attributes {stable_mosaic.version = 11 : i64} {
  func.func @_ae_kernel(%arg0: i32, %arg1: memref<8x16xbf16, #tpu.memory_space<vmem>>, %arg2: memref<16x384xbf16, #tpu.memory_space<vmem>>, %arg3: memref<1x384xf32, #tpu.memory_space<vmem>>, %arg4: memref<384x384xbf16, #tpu.memory_space<vmem>>, %arg5: memref<1x384xf32, #tpu.memory_space<vmem>>, %arg6: memref<384x384xbf16, #tpu.memory_space<vmem>>, %arg7: memref<1x384xf32, #tpu.memory_space<vmem>>, %arg8: memref<384x384xbf16, #tpu.memory_space<vmem>>, %arg9: memref<1x384xf32, #tpu.memory_space<vmem>>, %arg10: memref<384x128xbf16, #tpu.memory_space<vmem>>, %arg11: memref<1x128xf32, #tpu.memory_space<vmem>>, %arg12: memref<8x128xf32, #tpu.memory_space<vmem>>) attributes {dimension_semantics = [#tpu.dimension_semantics<parallel>], iteration_bounds = array<i64: 1>, scalar_prefetch = 0 : i64, scratch_operands = 0 : i64, tpu.core_type = #tpu.core_type<tc>, window_params = [{transform_indices = @transform_0, window_bounds = array<i64: 8, 16>}, {pipeline_mode = #tpu.pipeline_mode<synchronous>, transform_indices = @transform_1, window_bounds = array<i64: 16, 384>}, {pipeline_mode = #tpu.pipeline_mode<synchronous>, transform_indices = @transform_2, window_bounds = array<i64: 1, 384>}, {pipeline_mode = #tpu.pipeline_mode<synchronous>, transform_indices = @transform_3, window_bounds = array<i64: 384, 384>}, {pipeline_mode = #tpu.pipeline_mode<synchronous>, transform_indices = @transform_4, window_bounds = array<i64: 1, 384>}, {pipeline_mode = #tpu.pipeline_mode<synchronous>, transform_indices = @transform_5, window_bounds = array<i64: 384, 384>}, {pipeline_mode = #tpu.pipeline_mode<synchronous>, transform_indices = @transform_6, window_bounds = array<i64: 1, 384>}, {pipeline_mode = #tpu.pipeline_mode<synchronous>, transform_indices = @transform_7, window_bounds = array<i64: 384, 384>}, {pipeline_mode = #tpu.pipeline_mode<synchronous>, transform_indices = @transform_8, window_bounds = array<i64: 1, 384>}, {pipeline_mode = #tpu.pipeline_mode<synchronous>, transform_indices = @transform_9, window_bounds = array<i64: 384, 128>}, {pipeline_mode = #tpu.pipeline_mode<synchronous>, transform_indices = @transform_10, window_bounds = array<i64: 1, 128>}, {transform_indices = @transform_11, window_bounds = array<i64: 8, 128>}]} {
    %c0 = arith.constant 0 : index
    %c0_0 = arith.constant 0 : index
    %0 = vector.load %arg1[%c0, %c0_0] : memref<8x16xbf16, #tpu.memory_space<vmem>>, vector<8x16xbf16>
    %c0_1 = arith.constant 0 : index
    %c0_2 = arith.constant 0 : index
    %1 = vector.load %arg2[%c0_1, %c0_2] : memref<16x384xbf16, #tpu.memory_space<vmem>>, vector<16x384xbf16>
    %cst = arith.constant dense<0.000000e+00> : vector<8x384xf32>
    %2 = tpu.matmul %0, %1, %cst {dimension_numbers = #tpu.dot_dimension_numbers<[1], [0], [0], [1], [0, 0, 1, 1], [], []>} : vector<8x16xbf16>, vector<16x384xbf16>, vector<8x384xf32> -> vector<8x384xf32>
    %c0_3 = arith.constant 0 : index
    %c0_4 = arith.constant 0 : index
    %3 = vector.load %arg3[%c0_3, %c0_4] : memref<1x384xf32, #tpu.memory_space<vmem>>, vector<1x384xf32>
    %4 = vector.broadcast %3 : vector<1x384xf32> to vector<8x384xf32>
    %5 = arith.addf %2, %4 : vector<8x384xf32>
    %cst_5 = arith.constant 5.000000e-01 : f32
    %6 = vector.broadcast %cst_5 : f32 to vector<8x384xf32>
    %7 = arith.mulf %5, %6 : vector<8x384xf32>
    %8 = math.tanh %7 : vector<8x384xf32>
    %cst_6 = arith.constant 5.000000e-01 : f32
    %9 = vector.broadcast %cst_6 : f32 to vector<8x384xf32>
    %10 = arith.mulf %8, %9 : vector<8x384xf32>
    %cst_7 = arith.constant 5.000000e-01 : f32
    %11 = vector.broadcast %cst_7 : f32 to vector<8x384xf32>
    %12 = arith.addf %10, %11 : vector<8x384xf32>
    %13 = arith.truncf %12 : vector<8x384xf32> to vector<8x384xbf16>
    %c0_8 = arith.constant 0 : index
    %c0_9 = arith.constant 0 : index
    %14 = vector.load %arg4[%c0_8, %c0_9] : memref<384x384xbf16, #tpu.memory_space<vmem>>, vector<384x384xbf16>
    %cst_10 = arith.constant dense<0.000000e+00> : vector<8x384xf32>
    %15 = tpu.matmul %13, %14, %cst_10 {dimension_numbers = #tpu.dot_dimension_numbers<[1], [0], [0], [1], [0, 0, 1, 1], [], []>} : vector<8x384xbf16>, vector<384x384xbf16>, vector<8x384xf32> -> vector<8x384xf32>
    %c0_11 = arith.constant 0 : index
    %c0_12 = arith.constant 0 : index
    %16 = vector.load %arg5[%c0_11, %c0_12] : memref<1x384xf32, #tpu.memory_space<vmem>>, vector<1x384xf32>
    %17 = vector.broadcast %16 : vector<1x384xf32> to vector<8x384xf32>
    %18 = arith.addf %15, %17 : vector<8x384xf32>
    %cst_13 = arith.constant 5.000000e-01 : f32
    %19 = vector.broadcast %cst_13 : f32 to vector<8x384xf32>
    %20 = arith.mulf %18, %19 : vector<8x384xf32>
    %21 = math.tanh %20 : vector<8x384xf32>
    %cst_14 = arith.constant 5.000000e-01 : f32
    %22 = vector.broadcast %cst_14 : f32 to vector<8x384xf32>
    %23 = arith.mulf %21, %22 : vector<8x384xf32>
    %cst_15 = arith.constant 5.000000e-01 : f32
    %24 = vector.broadcast %cst_15 : f32 to vector<8x384xf32>
    %25 = arith.addf %23, %24 : vector<8x384xf32>
    %26 = arith.truncf %25 : vector<8x384xf32> to vector<8x384xbf16>
    %c0_16 = arith.constant 0 : index
    %c0_17 = arith.constant 0 : index
    %27 = vector.load %arg6[%c0_16, %c0_17] : memref<384x384xbf16, #tpu.memory_space<vmem>>, vector<384x384xbf16>
    %cst_18 = arith.constant dense<0.000000e+00> : vector<8x384xf32>
    %28 = tpu.matmul %26, %27, %cst_18 {dimension_numbers = #tpu.dot_dimension_numbers<[1], [0], [0], [1], [0, 0, 1, 1], [], []>} : vector<8x384xbf16>, vector<384x384xbf16>, vector<8x384xf32> -> vector<8x384xf32>
    %c0_19 = arith.constant 0 : index
    %c0_20 = arith.constant 0 : index
    %29 = vector.load %arg7[%c0_19, %c0_20] : memref<1x384xf32, #tpu.memory_space<vmem>>, vector<1x384xf32>
    %30 = vector.broadcast %29 : vector<1x384xf32> to vector<8x384xf32>
    %31 = arith.addf %28, %30 : vector<8x384xf32>
    %cst_21 = arith.constant 5.000000e-01 : f32
    %32 = vector.broadcast %cst_21 : f32 to vector<8x384xf32>
    %33 = arith.mulf %31, %32 : vector<8x384xf32>
    %34 = math.tanh %33 : vector<8x384xf32>
    %cst_22 = arith.constant 5.000000e-01 : f32
    %35 = vector.broadcast %cst_22 : f32 to vector<8x384xf32>
    %36 = arith.mulf %34, %35 : vector<8x384xf32>
    %cst_23 = arith.constant 5.000000e-01 : f32
    %37 = vector.broadcast %cst_23 : f32 to vector<8x384xf32>
    %38 = arith.addf %36, %37 : vector<8x384xf32>
    %39 = arith.truncf %38 : vector<8x384xf32> to vector<8x384xbf16>
    %c0_24 = arith.constant 0 : index
    %c0_25 = arith.constant 0 : index
    %40 = vector.load %arg8[%c0_24, %c0_25] : memref<384x384xbf16, #tpu.memory_space<vmem>>, vector<384x384xbf16>
    %cst_26 = arith.constant dense<0.000000e+00> : vector<8x384xf32>
    %41 = tpu.matmul %39, %40, %cst_26 {dimension_numbers = #tpu.dot_dimension_numbers<[1], [0], [0], [1], [0, 0, 1, 1], [], []>} : vector<8x384xbf16>, vector<384x384xbf16>, vector<8x384xf32> -> vector<8x384xf32>
    %c0_27 = arith.constant 0 : index
    %c0_28 = arith.constant 0 : index
    %42 = vector.load %arg9[%c0_27, %c0_28] : memref<1x384xf32, #tpu.memory_space<vmem>>, vector<1x384xf32>
    %43 = vector.broadcast %42 : vector<1x384xf32> to vector<8x384xf32>
    %44 = arith.addf %41, %43 : vector<8x384xf32>
    %cst_29 = arith.constant 5.000000e-01 : f32
    %45 = vector.broadcast %cst_29 : f32 to vector<8x384xf32>
    %46 = arith.mulf %44, %45 : vector<8x384xf32>
    %47 = math.tanh %46 : vector<8x384xf32>
    %cst_30 = arith.constant 5.000000e-01 : f32
    %48 = vector.broadcast %cst_30 : f32 to vector<8x384xf32>
    %49 = arith.mulf %47, %48 : vector<8x384xf32>
    %cst_31 = arith.constant 5.000000e-01 : f32
    %50 = vector.broadcast %cst_31 : f32 to vector<8x384xf32>
    %51 = arith.addf %49, %50 : vector<8x384xf32>
    %52 = arith.truncf %51 : vector<8x384xf32> to vector<8x384xbf16>
    %c0_32 = arith.constant 0 : index
    %c0_33 = arith.constant 0 : index
    %53 = vector.load %arg10[%c0_32, %c0_33] : memref<384x128xbf16, #tpu.memory_space<vmem>>, vector<384x128xbf16>
    %cst_34 = arith.constant dense<0.000000e+00> : vector<8x128xf32>
    %54 = tpu.matmul %52, %53, %cst_34 {dimension_numbers = #tpu.dot_dimension_numbers<[1], [0], [0], [1], [0, 0, 1, 1], [], []>} : vector<8x384xbf16>, vector<384x128xbf16>, vector<8x128xf32> -> vector<8x128xf32>
    %c0_35 = arith.constant 0 : index
    %c0_36 = arith.constant 0 : index
    %55 = vector.load %arg11[%c0_35, %c0_36] : memref<1x128xf32, #tpu.memory_space<vmem>>, vector<1x128xf32>
    %56 = vector.broadcast %55 : vector<1x128xf32> to vector<8x128xf32>
    %57 = arith.addf %54, %56 : vector<8x128xf32>
    %c0_37 = arith.constant 0 : index
    %c0_38 = arith.constant 0 : index
    %58 = vector.load %arg12[%c0_37, %c0_38] : memref<8x128xf32, #tpu.memory_space<vmem>>, vector<8x128xf32>
    tpu.vector_store %arg12[%c0_37, %c0_38], %57 {strides = array<i32>} : memref<8x128xf32, #tpu.memory_space<vmem>>, vector<8x128xf32>,
    return
  }
  func.func @transform_0(%arg0: i32) -> (i32, i32) {
    %c0_i32 = arith.constant 0 : i32
    %c0_i32_0 = arith.constant 0 : i32
    return %arg0, %c0_i32 : i32, i32
  }
  func.func @transform_1(%arg0: i32) -> (i32, i32) {
    %c0_i32 = arith.constant 0 : i32
    %c0_i32_0 = arith.constant 0 : i32
    %c0_i32_1 = arith.constant 0 : i32
    return %c0_i32, %c0_i32_0 : i32, i32
  }
  func.func @transform_2(%arg0: i32) -> (i32, i32) {
    %c0_i32 = arith.constant 0 : i32
    %c0_i32_0 = arith.constant 0 : i32
    %c0_i32_1 = arith.constant 0 : i32
    return %c0_i32, %c0_i32_0 : i32, i32
  }
  func.func @transform_3(%arg0: i32) -> (i32, i32) {
    %c0_i32 = arith.constant 0 : i32
    %c0_i32_0 = arith.constant 0 : i32
    %c0_i32_1 = arith.constant 0 : i32
    return %c0_i32, %c0_i32_0 : i32, i32
  }
  func.func @transform_4(%arg0: i32) -> (i32, i32) {
    %c0_i32 = arith.constant 0 : i32
    %c0_i32_0 = arith.constant 0 : i32
    %c0_i32_1 = arith.constant 0 : i32
    return %c0_i32, %c0_i32_0 : i32, i32
  }
  func.func @transform_5(%arg0: i32) -> (i32, i32) {
    %c0_i32 = arith.constant 0 : i32
    %c0_i32_0 = arith.constant 0 : i32
    %c0_i32_1 = arith.constant 0 : i32
    return %c0_i32, %c0_i32_0 : i32, i32
  }
  func.func @transform_6(%arg0: i32) -> (i32, i32) {
    %c0_i32 = arith.constant 0 : i32
    %c0_i32_0 = arith.constant 0 : i32
    %c0_i32_1 = arith.constant 0 : i32
    return %c0_i32, %c0_i32_0 : i32, i32
  }
  func.func @transform_7(%arg0: i32) -> (i32, i32) {
    %c0_i32 = arith.constant 0 : i32
    %c0_i32_0 = arith.constant 0 : i32
    %c0_i32_1 = arith.constant 0 : i32
    return %c0_i32, %c0_i32_0 : i32, i32
  }
  func.func @transform_8(%arg0: i32) -> (i32, i32) {
    %c0_i32 = arith.constant 0 : i32
    %c0_i32_0 = arith.constant 0 : i32
    %c0_i32_1 = arith.constant 0 : i32
    return %c0_i32, %c0_i32_0 : i32, i32
  }
  func.func @transform_9(%arg0: i32) -> (i32, i32) {
    %c0_i32 = arith.constant 0 : i32
    %c0_i32_0 = arith.constant 0 : i32
    %c0_i32_1 = arith.constant 0 : i32
    return %c0_i32, %c0_i32_0 : i32, i32
  }
  func.func @transform_10(%arg0: i32) -> (i32, i32) {
    %c0_i32 = arith.constant 0 : i32
    %c0_i32_0 = arith.constant 0 : i32
    %c0_i32_1 = arith.constant 0 : i32
    return %c0_i32, %c0_i32_0 : i32, i32
  }
  func.func @transform_11(%arg0: i32) -> (i32, i32) {
    %c0_i32 = arith.constant 0 : i32
    %c0_i32_0 = arith.constant 0 : i32
    return %arg0, %c0_i32 : i32, i32
  }
}

</mosaic_0001>

<llo_original>
// kernel: autoencoder_forward.1
$region0: #{autoencoder_forward.1}
  #allocation0 [shape = 'u32[]', space=smem, size = 0x4, offset = 0x4, fixed_abs, tag = 'smem constant byte address 0x4 - core index']
  #allocation1 [shape = 'u32[72,128]{1,0:T(1,128)}', space=vmem, size = 0x9000, scoped, tag = 'internal scratch']
  %s0 = inlined_call_operand.vmem [shape: bf16[8,16], index: 0, kind: input, shape index: {}]
  %s1 = inlined_call_operand.hbm [shape: bf16[16,384], index: 1, kind: input, shape index: {}]
  %s2 = inlined_call_operand.vmem [shape: f32[1,384], index: 2, kind: input, shape index: {}]
  %s3 = inlined_call_operand.hbm [shape: bf16[384,384], index: 3, kind: input, shape index: {}]
  %s4 = inlined_call_operand.vmem [shape: f32[1,384], index: 4, kind: input, shape index: {}]
  %s5 = inlined_call_operand.hbm [shape: bf16[384,384], index: 5, kind: input, shape index: {}]
  %s6 = inlined_call_operand.vmem [shape: f32[1,384], index: 6, kind: input, shape index: {}]
  %s7 = inlined_call_operand.hbm [shape: bf16[384,384], index: 7, kind: input, shape index: {}]
  %s8 = inlined_call_operand.vmem [shape: f32[1,384], index: 8, kind: input, shape index: {}]
  %s9 = inlined_call_operand.hbm [shape: bf16[384,128], index: 9, kind: input, shape index: {}]
  %s10 = inlined_call_operand.vmem [shape: f32[1,128], index: 10, kind: input, shape index: {}]
  %s11 = inlined_call_operand.hbm [shape: f32[8,128], index: 11, kind: output, shape index: {}]
  %s12 = sld [smem:[#allocation0]]
  $region74: #{autoencoder_forward.1} parent=0
    _
  %s14 = ssub.s32 1, %s12
  %s15 = scalar_select 0, %s14, %s12
  $region1: #{autoencoder_forward.1} parent=0
    #allocation2 [shape = 'u8[12288]{0}', space=vmem, size = 0x3000, scoped, tag = 'input window, operand 1, single buffered']
    #allocation3 [shape = 's32[1]{0}', space=sflag, size = 0x4, scoped, tag = 'scoped memory for autoencoder_forward.1']
    #allocation4 [shape = 's32[1]{0}', space=sflag, size = 0x4, scoped, tag = 'scoped memory for autoencoder_forward.1']
    #allocation5 [shape = 'u8[294912]{0}', space=vmem, size = 0x48000, scoped, tag = 'input window, operand 3, single buffered']
    #allocation6 [shape = 's32[1]{0}', space=sflag, size = 0x4, scoped, tag = 'scoped memory for autoencoder_forward.1']
    #allocation7 [shape = 'u8[294912]{0}', space=vmem, size = 0x48000, scoped, tag = 'input window, operand 5, single buffered']
    #allocation8 [shape = 'u8[294912]{0}', space=vmem, size = 0x48000, scoped, tag = 'input window, operand 7, single buffered']
    #allocation9 [shape = 's32[1]{0}', space=sflag, size = 0x4, scoped, tag = 'scoped memory for autoencoder_forward.1']
    #allocation10 [shape = 'u8[98304]{0}', space=vmem, size = 0x18000, scoped, tag = 'input window, operand 9, single buffered']
    #allocation11 [shape = 'u8[4096]{0}', space=vmem, size = 0x1000, scoped, tag = 'output window, operand 0, single buffered']
    %16 = vsyncpa [#allocation3], 0
    %17 = vsyncpa [#allocation6], 0
    %18 = vsyncpa [#allocation9], 0
    %19 = vsyncpa [#allocation4], 0
    // Predicated region
    $region2: #{autoencoder_forward.1} parent=1 // pred_check
      _
    $region3: #{autoencoder_forward.1} parent=1 // pred_check_branch
      %21 = sbr.rel (0) target = $region5
    $region4: #{autoencoder_forward.1} parent=1 // pred_region
      _
    $region5: #{autoencoder_forward.1} parent=1 // pred_fallthru
      _
    // Predicated region
    $region6: #{autoencoder_forward.1} parent=1 // pred_check
      _
    $region7: #{autoencoder_forward.1} parent=1 // pred_check_branch
      %23 = sbr.rel (0) target = $region9
    $region8: #{autoencoder_forward.1} parent=1 // pred_region
      %25 = vsyncadd [#allocation3], 0
      %s26 = sshll.u32 %s1, 4
      %s27 = int_to_ptr.hbm [resolvable:$true] %s26
      %s28 = sshll.u32 [#allocation2], 4
      %s29 = int_to_ptr.vmem [resolvable:$true] %s28
      %34 = dma.hbm_to_vmem [thread:$0]  %s27, 384, %s29, [#allocation3], 192, 192, 12
    $region9: #{autoencoder_forward.1} parent=1 // pred_fallthru
      _
    // Predicated region
    $region10: #{autoencoder_forward.1} parent=1 // pred_check
      _
    $region11: #{autoencoder_forward.1} parent=1 // pred_check_branch
      %36 = sbr.rel (0) target = $region13
    $region12: #{autoencoder_forward.1} parent=1 // pred_region
      _
    $region13: #{autoencoder_forward.1} parent=1 // pred_fallthru
      _
    // Predicated region
    $region14: #{autoencoder_forward.1} parent=1 // pred_check
      _
    $region15: #{autoencoder_forward.1} parent=1 // pred_check_branch
      %38 = sbr.rel (0) target = $region17
    $region16: #{autoencoder_forward.1} parent=1 // pred_region
      %40 = vsyncadd [#allocation6], 0
      %s41 = sshll.u32 %s3, 4
      %s42 = int_to_ptr.hbm [resolvable:$true] %s41
      %s43 = sshll.u32 [#allocation5], 4
      %s44 = int_to_ptr.vmem [resolvable:$true] %s43
      %49 = dma.hbm_to_vmem [thread:$0]  %s42, 9216, %s44, [#allocation6], 192, 192, 12
    $region17: #{autoencoder_forward.1} parent=1 // pred_fallthru
      _
    // Predicated region
    $region18: #{autoencoder_forward.1} parent=1 // pred_check
      _
    $region19: #{autoencoder_forward.1} parent=1 // pred_check_branch
      %51 = sbr.rel (0) target = $region21
    $region20: #{autoencoder_forward.1} parent=1 // pred_region
      _
    $region21: #{autoencoder_forward.1} parent=1 // pred_fallthru
      _
    // Predicated region
    $region22: #{autoencoder_forward.1} parent=1 // pred_check
      _
    $region23: #{autoencoder_forward.1} parent=1 // pred_check_branch
      %53 = sbr.rel (0) target = $region25
    $region24: #{autoencoder_forward.1} parent=1 // pred_region
      %55 = vsyncadd [#allocation6], 0
      %s56 = sshll.u32 %s5, 4
      %s57 = int_to_ptr.hbm [resolvable:$true] %s56
      %s58 = sshll.u32 [#allocation7], 4
      %s59 = int_to_ptr.vmem [resolvable:$true] %s58
      %64 = dma.hbm_to_vmem [thread:$0]  %s57, 9216, %s59, [#allocation6], 192, 192, 12
    $region25: #{autoencoder_forward.1} parent=1 // pred_fallthru
      _
    // Predicated region
    $region26: #{autoencoder_forward.1} parent=1 // pred_check
      _
    $region27: #{autoencoder_forward.1} parent=1 // pred_check_branch
      %66 = sbr.rel (0) target = $region29
    $region28: #{autoencoder_forward.1} parent=1 // pred_region
      _
    $region29: #{autoencoder_forward.1} parent=1 // pred_fallthru
      _
    // Predicated region
    $region30: #{autoencoder_forward.1} parent=1 // pred_check
      _
    $region31: #{autoencoder_forward.1} parent=1 // pred_check_branch
      %68 = sbr.rel (0) target = $region33
    $region32: #{autoencoder_forward.1} parent=1 // pred_region
      %70 = vsyncadd [#allocation9], 0
      %s71 = sshll.u32 %s7, 4
      %s72 = int_to_ptr.hbm [resolvable:$true] %s71
      %s73 = sshll.u32 [#allocation8], 4
      %s74 = int_to_ptr.vmem [resolvable:$true] %s73
      %79 = dma.hbm_to_vmem [thread:$0]  %s72, 9216, %s74, [#allocation9], 192, 192, 12
    $region33: #{autoencoder_forward.1} parent=1 // pred_fallthru
      _
    // Predicated region
    $region34: #{autoencoder_forward.1} parent=1 // pred_check
      _
    $region35: #{autoencoder_forward.1} parent=1 // pred_check_branch
      %81 = sbr.rel (0) target = $region37
    $region36: #{autoencoder_forward.1} parent=1 // pred_region
      _
    $region37: #{autoencoder_forward.1} parent=1 // pred_fallthru
      _
    // Predicated region
    $region38: #{autoencoder_forward.1} parent=1 // pred_check
      _
    $region39: #{autoencoder_forward.1} parent=1 // pred_check_branch
      %83 = sbr.rel (0) target = $region41
    $region40: #{autoencoder_forward.1} parent=1 // pred_region
      %85 = vsyncadd [#allocation9], 0
      %s86 = sshll.u32 %s9, 4
      %s87 = int_to_ptr.hbm [resolvable:$true] %s86
      %s88 = sshll.u32 [#allocation10], 4
      %s89 = int_to_ptr.vmem [resolvable:$true] %s88
      %94 = dma.hbm_to_vmem [thread:$0]  %s87, 3072, %s89, [#allocation9], 64, 64, 4
    $region41: #{autoencoder_forward.1} parent=1 // pred_fallthru
      _
    // Predicated region
    $region42: #{autoencoder_forward.1} parent=1 // pred_check
      _
    $region43: #{autoencoder_forward.1} parent=1 // pred_check_branch
      %96 = sbr.rel (0) target = $region45
    $region44: #{autoencoder_forward.1} parent=1 // pred_region
      _
    $region45: #{autoencoder_forward.1} parent=1 // pred_fallthru
      _
    // Predicated region
    $region46: #{autoencoder_forward.1} parent=1 // pred_check
      _
    $region47: #{autoencoder_forward.1} parent=1 // pred_check_branch
      %98 = sbr.rel (0) target = $region49
    $region48: #{autoencoder_forward.1} parent=1 // pred_region
      %100 = dma.done [#allocation3], 384
    $region49: #{autoencoder_forward.1} parent=1 // pred_fallthru
      _
    // Predicated region
    $region50: #{autoencoder_forward.1} parent=1 // pred_check
      _
    $region51: #{autoencoder_forward.1} parent=1 // pred_check_branch
      %102 = sbr.rel (0) target = $region53
    $region52: #{autoencoder_forward.1} parent=1 // pred_region
      %104 = dma.done [#allocation6], 9216
    $region53: #{autoencoder_forward.1} parent=1 // pred_fallthru
      _
    // Predicated region
    $region54: #{autoencoder_forward.1} parent=1 // pred_check
      _
    $region55: #{autoencoder_forward.1} parent=1 // pred_check_branch
      %106 = sbr.rel (0) target = $region57
    $region56: #{autoencoder_forward.1} parent=1 // pred_region
      %108 = dma.done [#allocation6], 9216
    $region57: #{autoencoder_forward.1} parent=1 // pred_fallthru
      _
    // Predicated region
    $region58: #{autoencoder_forward.1} parent=1 // pred_check
      _
    $region59: #{autoencoder_forward.1} parent=1 // pred_check_branch
      %110 = sbr.rel (0) target = $region61
    $region60: #{autoencoder_forward.1} parent=1 // pred_region
      %112 = dma.done [#allocation9], 9216
    $region61: #{autoencoder_forward.1} parent=1 // pred_fallthru
      _
    // Predicated region
    $region62: #{autoencoder_forward.1} parent=1 // pred_check
      _
    $region63: #{autoencoder_forward.1} parent=1 // pred_check_branch
      %114 = sbr.rel (0) target = $region65
    $region64: #{autoencoder_forward.1} parent=1 // pred_region
      %116 = dma.done [#allocation9], 3072
    $region65: #{autoencoder_forward.1} parent=1 // pred_fallthru
      _
    %v118 = vld [vmem:[%s0] sm:$0xf]
    %v119 = vld [vmem:[#allocation2] sm:$0xff]
    %v120 = vld [vmem:[#allocation2 + $0x8] sm:$0xf]
    %v121 = vld [vmem:[#allocation2 + $0xc] sm:$0xff]
    %v122 = vld [vmem:[#allocation2 + $0x14] sm:$0xf]
    %v123 = vld [vmem:[%s2] sm:$0x7]
    %v125 = vperm.slane %v123, 0
    %v126 = vperm.slane %v123, 1
    %v127 = vperm.slane %v123, 2
    %v135 = vunpack.c.l.b16 %v119
    %v136 = vunpack.c.h.b16 %v119
    %v137 = vunpack.c.l.b16 %v120
    %v138 = vunpack.c.l.b16 %v121
    %v139 = vunpack.c.h.b16 %v121
    %v140 = vunpack.c.l.b16 %v122
    %v141 = vpack.c.b16 %v138, %v135
    %v142 = vpack.c.b16 %v139, %v136
    %v143 = vpack.c.b16 %v140, %v137
    %vm147 = vcmask 130048
    %v149 = vsel %vm147, %v118, 0
    %151 = vmatpush.bf16.msra.mxu0 0
    %152 = vmatpush.bf16.msra.mxu0 0
    %153 = vmatpush.bf16.msra.mxu0 0
    %154 = vmatpush.bf16.msra.mxu0 0
    %155 = vmatpush.bf16.msra.mxu0 0
    %156 = vmatpush.bf16.msra.mxu0 0
    %157 = vmatpush.bf16.msra.mxu0 0
    %158 = vmatpush.bf16.msra.mxu0 %v141
    %159 = vmatmul.bf16.gmra.mxu0 %v149
    %v160 = vpop.f32.mrf.mxu0
    %v161 = vadd.f32 %v125, %v160
    %v162 = vpop.f32.mrf.mxu0
    %163 = vdwg.mxu0
    %164 = vmatpush.bf16.msra.mxu0 0
    %165 = vmatpush.bf16.msra.mxu0 0
    %166 = vmatpush.bf16.msra.mxu0 0
    %167 = vmatpush.bf16.msra.mxu0 0
    %168 = vmatpush.bf16.msra.mxu0 0
    %169 = vmatpush.bf16.msra.mxu0 0
    %170 = vmatpush.bf16.msra.mxu0 0
    %171 = vmatpush.bf16.msra.mxu0 %v142
    %172 = vmatmul.bf16.gmra.mxu0 %v149
    %v173 = vpop.f32.mrf.mxu0
    %v174 = vadd.f32 %v126, %v173
    %v175 = vpop.f32.mrf.mxu0
    %176 = vdwg.mxu0
    %177 = vmatpush.bf16.msra.mxu0 0
    %178 = vmatpush.bf16.msra.mxu0 0
    %179 = vmatpush.bf16.msra.mxu0 0
    %180 = vmatpush.bf16.msra.mxu0 0
    %181 = vmatpush.bf16.msra.mxu0 0
    %182 = vmatpush.bf16.msra.mxu0 0
    %183 = vmatpush.bf16.msra.mxu0 0
    %184 = vmatpush.bf16.msra.mxu0 %v143
    %185 = vmatmul.bf16.gmra.mxu0 %v149
    %v186 = vpop.f32.mrf.mxu0
    %v187 = vadd.f32 %v127, %v186
    %v188 = vpop.f32.mrf.mxu0
    %189 = vdwg.mxu0
    %v190 = vmul.f32 %v161, 0.5
    %v191 = vmul.f32 %v174, 0.5
    %v192 = vmul.f32 %v187, 0.5
    %v193 = vtanh.pop %v190
    %v194 = vtanh.pop %v191
    %v195 = vtanh.pop %v192
    %v196 = vmul.f32 %v193, 0.5
    %v197 = vmul.f32 %v194, 0.5
    %v198 = vmul.f32 %v195, 0.5
    %v199 = vadd.f32 %v196, 0.5
    %v200 = vadd.f32 %v197, 0.5
    %v201 = vadd.f32 %v198, 0.5
    %v202 = vpack.c.bf16 %v199, %v199
    %v203 = vpack.c.bf16 %v200, %v200
    %v204 = vpack.c.bf16 %v201, %v201
    %v205 = vld [vmem:[#allocation5] sm:$0xff]
    %v206 = vld [vmem:[#allocation5 + $0x8] sm:$0xf]
    %v207 = vld [vmem:[#allocation5 + $0xc] sm:$0xff]
    %v208 = vld [vmem:[#allocation5 + $0x14] sm:$0xf]
    %v209 = vld [vmem:[#allocation5 + $0x18] sm:$0xff]
    %v210 = vld [vmem:[#allocation5 + $0x20] sm:$0xf]
    %v211 = vld [vmem:[#allocation5 + $0x24] sm:$0xff]
    %v212 = vld [vmem:[#allocation5 + $0x2c] sm:$0xf]
    %v213 = vld [vmem:[#allocation5 + $0x30] sm:$0xff]
    %v214 = vld [vmem:[#allocation5 + $0x38] sm:$0xf]
    %v215 = vld [vmem:[#allocation5 + $0x3c] sm:$0xff]
    %v216 = vld [vmem:[#allocation5 + $0x44] sm:$0xf]
    %v217 = vld [vmem:[#allocation5 + $0x48] sm:$0xff]
    %v218 = vld [vmem:[#allocation5 + $0x50] sm:$0xf]
    %v219 = vld [vmem:[#allocation5 + $0x54] sm:$0xff]
    %v220 = vld [vmem:[#allocation5 + $0x5c] sm:$0xf]
    %v221 = vld [vmem:[#allocation5 + $0x60] sm:$0xff]
    %v222 = vld [vmem:[#allocation5 + $0x68] sm:$0xf]
    %v223 = vld [vmem:[#allocation5 + $0x6c] sm:$0xff]
    %v224 = vld [vmem:[#allocation5 + $0x74] sm:$0xf]
    %v225 = vld [vmem:[#allocation5 + $0x78] sm:$0xff]
    %v226 = vld [vmem:[#allocation5 + $0x80] sm:$0xf]
    %v227 = vld [vmem:[#allocation5 + $0x84] sm:$0xff]
    %v228 = vld [vmem:[#allocation5 + $0x8c] sm:$0xf]
    %v229 = vld [vmem:[#allocation5 + $0x90] sm:$0xff]
    %v230 = vld [vmem:[#allocation5 + $0x98] sm:$0xf]
    %v231 = vld [vmem:[#allocation5 + $0x9c] sm:$0xff]
    %v232 = vld [vmem:[#allocation5 + $0xa4] sm:$0xf]
    %v233 = vld [vmem:[#allocation5 + $0xa8] sm:$0xff]
    %v234 = vld [vmem:[#allocation5 + $0xb0] sm:$0xf]
    %v235 = vld [vmem:[#allocation5 + $0xb4] sm:$0xff]
    %v236 = vld [vmem:[#allocation5 + $0xbc] sm:$0xf]
    %v237 = vld [vmem:[#allocation5 + $0xc0] sm:$0xff]
    %v238 = vld [vmem:[#allocation5 + $0xc8] sm:$0xf]
    %v239 = vld [vmem:[#allocation5 + $0xcc] sm:$0xff]
    %v240 = vld [vmem:[#allocation5 + $0xd4] sm:$0xf]
    %v241 = vld [vmem:[#allocation5 + $0xd8] sm:$0xff]
    %v242 = vld [vmem:[#allocation5 + $0xe0] sm:$0xf]
    %v243 = vld [vmem:[#allocation5 + $0xe4] sm:$0xff]
    %v244 = vld [vmem:[#allocation5 + $0xec] sm:$0xf]
    %v245 = vld [vmem:[#allocation5 + $0xf0] sm:$0xff]
    %v246 = vld [vmem:[#allocation5 + $0xf8] sm:$0xf]
    %v247 = vld [vmem:[#allocation5 + $0xfc] sm:$0xff]
    %v248 = vld [vmem:[#allocation5 + $0x104] sm:$0xf]
    %v249 = vld [vmem:[#allocation5 + $0x108] sm:$0xff]
    %v250 = vld [vmem:[#allocation5 + $0x110] sm:$0xf]
    %v251 = vld [vmem:[#allocation5 + $0x114] sm:$0xff]
    %v252 = vld [vmem:[#allocation5 + $0x11c] sm:$0xf]
    %v253 = vld [vmem:[#allocation5 + $0x120] sm:$0xff]
    %v254 = vld [vmem:[#allocation5 + $0x128] sm:$0xf]
    %v255 = vld [vmem:[#allocation5 + $0x12c] sm:$0xff]
    %v256 = vld [vmem:[#allocation5 + $0x134] sm:$0xf]
    %v257 = vld [vmem:[#allocation5 + $0x138] sm:$0xff]
    %v258 = vld [vmem:[#allocation5 + $0x140] sm:$0xf]
    %v259 = vld [vmem:[#allocation5 + $0x144] sm:$0xff]
    %v260 = vld [vmem:[#allocation5 + $0x14c] sm:$0xf]
    %v261 = vld [vmem:[#allocation5 + $0x150] sm:$0xff]
    %v262 = vld [vmem:[#allocation5 + $0x158] sm:$0xf]
    %v263 = vld [vmem:[#allocation5 + $0x15c] sm:$0xff]
    %v264 = vld [vmem:[#allocation5 + $0x164] sm:$0xf]
    %v265 = vld [vmem:[#allocation5 + $0x168] sm:$0xff]
    %v266 = vld [vmem:[#allocation5 + $0x170] sm:$0xf]
    %v267 = vld [vmem:[#allocation5 + $0x174] sm:$0xff]
    %v268 = vld [vmem:[#allocation5 + $0x17c] sm:$0xf]
    %v269 = vld [vmem:[#allocation5 + $0x180] sm:$0xff]
    %v270 = vld [vmem:[#allocation5 + $0x188] sm:$0xf]
    %v271 = vld [vmem:[#allocation5 + $0x18c] sm:$0xff]
    %v272 = vld [vmem:[#allocation5 + $0x194] sm:$0xf]
    %v273 = vld [vmem:[#allocation5 + $0x198] sm:$0xff]
    %v274 = vld [vmem:[#allocation5 + $0x1a0] sm:$0xf]
    %v275 = vld [vmem:[#allocation5 + $0x1a4] sm:$0xff]
    %v276 = vld [vmem:[#allocation5 + $0x1ac] sm:$0xf]
    %v277 = vld [vmem:[#allocation5 + $0x1b0] sm:$0xff]
    %v278 = vld [vmem:[#allocation5 + $0x1b8] sm:$0xf]
    %v279 = vld [vmem:[#allocation5 + $0x1bc] sm:$0xff]
    %v280 = vld [vmem:[#allocation5 + $0x1c4] sm:$0xf]
    %v281 = vld [vmem:[#allocation5 + $0x1c8] sm:$0xff]
    %v282 = vld [vmem:[#allocation5 + $0x1d0] sm:$0xf]
    %v283 = vld [vmem:[#allocation5 + $0x1d4] sm:$0xff]
    %v284 = vld [vmem:[#allocation5 + $0x1dc] sm:$0xf]
    %v285 = vld [vmem:[#allocation5 + $0x1e0] sm:$0xff]
    %v286 = vld [vmem:[#allocation5 + $0x1e8] sm:$0xf]
    %v287 = vld [vmem:[#allocation5 + $0x1ec] sm:$0xff]
    %v288 = vld [vmem:[#allocation5 + $0x1f4] sm:$0xf]
    %v289 = vld [vmem:[#allocation5 + $0x1f8] sm:$0xff]
    %v290 = vld [vmem:[#allocation5 + $0x200] sm:$0xf]
    %v291 = vld [vmem:[#allocation5 + $0x204] sm:$0xff]
    %v292 = vld [vmem:[#allocation5 + $0x20c] sm:$0xf]
    %v293 = vld [vmem:[#allocation5 + $0x210] sm:$0xff]
    %v294 = vld [vmem:[#allocation5 + $0x218] sm:$0xf]
    %v295 = vld [vmem:[#allocation5 + $0x21c] sm:$0xff]
    %v296 = vld [vmem:[#allocation5 + $0x224] sm:$0xf]
    %v297 = vld [vmem:[#allocation5 + $0x228] sm:$0xff]
    %v298 = vld [vmem:[#allocation5 + $0x230] sm:$0xf]
    %v299 = vld [vmem:[#allocation5 + $0x234] sm:$0xff]
    %v300 = vld [vmem:[#allocation5 + $0x23c] sm:$0xf]
    %v301 = vld [vmem:[%s4] sm:$0x7]
    %v303 = vperm.slane %v301, 0
    %v304 = vperm.slane %v301, 1
    %v305 = vperm.slane %v301, 2
    %v405 = vunpack.c.l.b16 %v205
    %v406 = vunpack.c.h.b16 %v205
    %v407 = vunpack.c.l.b16 %v206
    %v408 = vunpack.c.l.b16 %v207
    %v409 = vunpack.c.h.b16 %v207
    %v410 = vunpack.c.l.b16 %v208
    %v411 = vunpack.c.l.b16 %v209
    %v412 = vunpack.c.h.b16 %v209
    %v413 = vunpack.c.l.b16 %v210
    %v414 = vunpack.c.l.b16 %v211
    %v415 = vunpack.c.h.b16 %v211
    %v416 = vunpack.c.l.b16 %v212
    %v417 = vunpack.c.l.b16 %v213
    %v418 = vunpack.c.h.b16 %v213
    %v419 = vunpack.c.l.b16 %v214
    %v420 = vunpack.c.l.b16 %v215
    %v421 = vunpack.c.h.b16 %v215
    %v422 = vunpack.c.l.b16 %v216
    %v423 = vunpack.c.l.b16 %v217
    %v424 = vunpack.c.h.b16 %v217
    %v425 = vunpack.c.l.b16 %v218
    %v426 = vunpack.c.l.b16 %v219
    %v427 = vunpack.c.h.b16 %v219
    %v428 = vunpack.c.l.b16 %v220
    %v429 = vunpack.c.l.b16 %v221
    %v430 = vunpack.c.h.b16 %v221
    %v431 = vunpack.c.l.b16 %v222
    %v432 = vunpack.c.l.b16 %v223
    %v433 = vunpack.c.h.b16 %v223
    %v434 = vunpack.c.l.b16 %v224
    %v435 = vunpack.c.l.b16 %v225
    %v436 = vunpack.c.h.b16 %v225
    %v437 = vunpack.c.l.b16 %v226
    %v438 = vunpack.c.l.b16 %v227
    %v439 = vunpack.c.h.b16 %v227
    %v440 = vunpack.c.l.b16 %v228
    %v441 = vunpack.c.l.b16 %v229
    %v442 = vunpack.c.h.b16 %v229
    %v443 = vunpack.c.l.b16 %v230
    %v444 = vunpack.c.l.b16 %v231
    %v445 = vunpack.c.h.b16 %v231
    %v446 = vunpack.c.l.b16 %v232
    %v447 = vunpack.c.l.b16 %v233
    %v448 = vunpack.c.h.b16 %v233
    %v449 = vunpack.c.l.b16 %v234
    %v450 = vunpack.c.l.b16 %v235
    %v451 = vunpack.c.h.b16 %v235
    %v452 = vunpack.c.l.b16 %v236
    %v453 = vunpack.c.l.b16 %v237
    %v454 = vunpack.c.h.b16 %v237
    %v455 = vunpack.c.l.b16 %v238
    %v456 = vunpack.c.l.b16 %v239
    %v457 = vunpack.c.h.b16 %v239
    %v458 = vunpack.c.l.b16 %v240
    %v459 = vunpack.c.l.b16 %v241
    %v460 = vunpack.c.h.b16 %v241
    %v461 = vunpack.c.l.b16 %v242
    %v462 = vunpack.c.l.b16 %v243
    %v463 = vunpack.c.h.b16 %v243
    %v464 = vunpack.c.l.b16 %v244
    %v465 = vunpack.c.l.b16 %v245
    %v466 = vunpack.c.h.b16 %v245
    %v467 = vunpack.c.l.b16 %v246
    %v468 = vunpack.c.l.b16 %v247
    %v469 = vunpack.c.h.b16 %v247
    %v470 = vunpack.c.l.b16 %v248
    %v471 = vunpack.c.l.b16 %v249
    %v472 = vunpack.c.h.b16 %v249
    %v473 = vunpack.c.l.b16 %v250
    %v474 = vunpack.c.l.b16 %v251
    %v475 = vunpack.c.h.b16 %v251
    %v476 = vunpack.c.l.b16 %v252
    %v477 = vunpack.c.l.b16 %v253
    %v478 = vunpack.c.h.b16 %v253
    %v479 = vunpack.c.l.b16 %v254
    %v480 = vunpack.c.l.b16 %v255
    %v481 = vunpack.c.h.b16 %v255
    %v482 = vunpack.c.l.b16 %v256
    %v483 = vunpack.c.l.b16 %v257
    %v484 = vunpack.c.h.b16 %v257
    %v485 = vunpack.c.l.b16 %v258
    %v486 = vunpack.c.l.b16 %v259
    %v487 = vunpack.c.h.b16 %v259
    %v488 = vunpack.c.l.b16 %v260
    %v489 = vunpack.c.l.b16 %v261
    %v490 = vunpack.c.h.b16 %v261
    %v491 = vunpack.c.l.b16 %v262
    %v492 = vunpack.c.l.b16 %v263
    %v493 = vunpack.c.h.b16 %v263
    %v494 = vunpack.c.l.b16 %v264
    %v495 = vunpack.c.l.b16 %v265
    %v496 = vunpack.c.h.b16 %v265
    %v497 = vunpack.c.l.b16 %v266
    %v498 = vunpack.c.l.b16 %v267
    %v499 = vunpack.c.h.b16 %v267
    %v500 = vunpack.c.l.b16 %v268
    %v501 = vunpack.c.l.b16 %v269
    %v502 = vunpack.c.h.b16 %v269
    %v503 = vunpack.c.l.b16 %v270
    %v504 = vunpack.c.l.b16 %v271
    %v505 = vunpack.c.h.b16 %v271
    %v506 = vunpack.c.l.b16 %v272
    %v507 = vunpack.c.l.b16 %v273
    %v508 = vunpack.c.h.b16 %v273
    %v509 = vunpack.c.l.b16 %v274
    %v510 = vunpack.c.l.b16 %v275
    %v511 = vunpack.c.h.b16 %v275
    %v512 = vunpack.c.l.b16 %v276
    %v513 = vunpack.c.l.b16 %v277
    %v514 = vunpack.c.h.b16 %v277
    %v515 = vunpack.c.l.b16 %v278
    %v516 = vunpack.c.l.b16 %v279
    %v517 = vunpack.c.h.b16 %v279
    %v518 = vunpack.c.l.b16 %v280
    %v519 = vunpack.c.l.b16 %v281
    %v520 = vunpack.c.h.b16 %v281
    %v521 = vunpack.c.l.b16 %v282
    %v522 = vunpack.c.l.b16 %v283
    %v523 = vunpack.c.h.b16 %v283
    %v524 = vunpack.c.l.b16 %v284
    %v525 = vunpack.c.l.b16 %v285
    %v526 = vunpack.c.h.b16 %v285
    %v527 = vunpack.c.l.b16 %v286
    %v528 = vunpack.c.l.b16 %v287
    %v529 = vunpack.c.h.b16 %v287
    %v530 = vunpack.c.l.b16 %v288
    %v531 = vunpack.c.l.b16 %v289
    %v532 = vunpack.c.h.b16 %v289
    %v533 = vunpack.c.l.b16 %v290
    %v534 = vunpack.c.l.b16 %v291
    %v535 = vunpack.c.h.b16 %v291
    %v536 = vunpack.c.l.b16 %v292
    %v537 = vunpack.c.l.b16 %v293
    %v538 = vunpack.c.h.b16 %v293
    %v539 = vunpack.c.l.b16 %v294
    %v540 = vunpack.c.l.b16 %v295
    %v541 = vunpack.c.h.b16 %v295
    %v542 = vunpack.c.l.b16 %v296
    %v543 = vunpack.c.l.b16 %v297
    %v544 = vunpack.c.h.b16 %v297
    %v545 = vunpack.c.l.b16 %v298
    %v546 = vunpack.c.l.b16 %v299
    %v547 = vunpack.c.h.b16 %v299
    %v548 = vunpack.c.l.b16 %v300
    %v549 = vpack.c.b16 %v408, %v405
    %v550 = vpack.c.b16 %v409, %v406
    %v551 = vpack.c.b16 %v410, %v407
    %v552 = vpack.c.b16 %v414, %v411
    %v553 = vpack.c.b16 %v415, %v412
    %v554 = vpack.c.b16 %v416, %v413
    %v555 = vpack.c.b16 %v420, %v417
    %v556 = vpack.c.b16 %v421, %v418
    %v557 = vpack.c.b16 %v422, %v419
    %v558 = vpack.c.b16 %v426, %v423
    %v559 = vpack.c.b16 %v427, %v424
    %v560 = vpack.c.b16 %v428, %v425
    %v561 = vpack.c.b16 %v432, %v429
    %v562 = vpack.c.b16 %v433, %v430
    %v563 = vpack.c.b16 %v434, %v431
    %v564 = vpack.c.b16 %v438, %v435
    %v565 = vpack.c.b16 %v439, %v436
    %v566 = vpack.c.b16 %v440, %v437
    %v567 = vpack.c.b16 %v444, %v441
    %v568 = vpack.c.b16 %v445, %v442
    %v569 = vpack.c.b16 %v446, %v443
    %v570 = vpack.c.b16 %v450, %v447
    %v571 = vpack.c.b16 %v451, %v448
    %v572 = vpack.c.b16 %v452, %v449
    %v573 = vpack.c.b16 %v456, %v453
    %v574 = vpack.c.b16 %v457, %v454
    %v575 = vpack.c.b16 %v458, %v455
    %v576 = vpack.c.b16 %v462, %v459
    %v577 = vpack.c.b16 %v463, %v460
    %v578 = vpack.c.b16 %v464, %v461
    %v579 = vpack.c.b16 %v468, %v465
    %v580 = vpack.c.b16 %v469, %v466
    %v581 = vpack.c.b16 %v470, %v467
    %v582 = vpack.c.b16 %v474, %v471
    %v583 = vpack.c.b16 %v475, %v472
    %v584 = vpack.c.b16 %v476, %v473
    %v585 = vpack.c.b16 %v480, %v477
    %v586 = vpack.c.b16 %v481, %v478
    %v587 = vpack.c.b16 %v482, %v479
    %v588 = vpack.c.b16 %v486, %v483
    %v589 = vpack.c.b16 %v487, %v484
    %v590 = vpack.c.b16 %v488, %v485
    %v591 = vpack.c.b16 %v492, %v489
    %v592 = vpack.c.b16 %v493, %v490
    %v593 = vpack.c.b16 %v494, %v491
    %v594 = vpack.c.b16 %v498, %v495
    %v595 = vpack.c.b16 %v499, %v496
    %v596 = vpack.c.b16 %v500, %v497
    %v597 = vpack.c.b16 %v504, %v501
    %v598 = vpack.c.b16 %v505, %v502
    %v599 = vpack.c.b16 %v506, %v503
    %v600 = vpack.c.b16 %v510, %v507
    %v601 = vpack.c.b16 %v511, %v508
    %v602 = vpack.c.b16 %v512, %v509
    %v603 = vpack.c.b16 %v516, %v513
    %v604 = vpack.c.b16 %v517, %v514
    %v605 = vpack.c.b16 %v518, %v515
    %v606 = vpack.c.b16 %v522, %v519
    %v607 = vpack.c.b16 %v523, %v520
    %v608 = vpack.c.b16 %v524, %v521
    %v609 = vpack.c.b16 %v528, %v525
    %v610 = vpack.c.b16 %v529, %v526
    %v611 = vpack.c.b16 %v530, %v527
    %v612 = vpack.c.b16 %v534, %v531
    %v613 = vpack.c.b16 %v535, %v532
    %v614 = vpack.c.b16 %v536, %v533
    %v615 = vpack.c.b16 %v540, %v537
    %v616 = vpack.c.b16 %v541, %v538
    %v617 = vpack.c.b16 %v542, %v539
    %v618 = vpack.c.b16 %v546, %v543
    %v619 = vpack.c.b16 %v547, %v544
    %v620 = vpack.c.b16 %v548, %v545
    %693 = vmatpush.bf16.msra.mxu0 %v570
    %694 = vmatpush.bf16.msra.mxu0 %v567
    %695 = vmatpush.bf16.msra.mxu0 %v564
    %696 = vmatpush.bf16.msra.mxu0 %v561
    %697 = vmatpush.bf16.msra.mxu0 %v558
    %698 = vmatpush.bf16.msra.mxu0 %v555
    %699 = vmatpush.bf16.msra.mxu0 %v552
    %700 = vmatpush.bf16.msra.mxu0 %v549
    %701 = vmatmul.bf16.gmra.mxu0 %v202
    %v702 = vpop.f32.mrf.mxu0
    %v703 = vadd.f32 %v303, %v702
    %v704 = vpop.f32.mrf.mxu0
    %705 = vdwg.mxu0
    %706 = vmatpush.bf16.msra.mxu0 %v594
    %707 = vmatpush.bf16.msra.mxu0 %v591
    %708 = vmatpush.bf16.msra.mxu0 %v588
    %709 = vmatpush.bf16.msra.mxu0 %v585
    %710 = vmatpush.bf16.msra.mxu0 %v582
    %711 = vmatpush.bf16.msra.mxu0 %v579
    %712 = vmatpush.bf16.msra.mxu0 %v576
    %713 = vmatpush.bf16.msra.mxu0 %v573
    %714 = vmatmul.bf16.gmra.mxu0 %v203
    %v715 = vpop.f32.mrf.mxu0
    %v716 = vadd.f32 %v703, %v715
    %v717 = vpop.f32.mrf.mxu0
    %718 = vdwg.mxu0
    %719 = vmatpush.bf16.msra.mxu0 %v618
    %720 = vmatpush.bf16.msra.mxu0 %v615
    %721 = vmatpush.bf16.msra.mxu0 %v612
    %722 = vmatpush.bf16.msra.mxu0 %v609
    %723 = vmatpush.bf16.msra.mxu0 %v606
    %724 = vmatpush.bf16.msra.mxu0 %v603
    %725 = vmatpush.bf16.msra.mxu0 %v600
    %726 = vmatpush.bf16.msra.mxu0 %v597
    %727 = vmatmul.bf16.gmra.mxu0 %v204
    %v728 = vpop.f32.mrf.mxu0
    %v729 = vadd.f32 %v716, %v728
    %v730 = vpop.f32.mrf.mxu0
    %731 = vdwg.mxu0
    %732 = vmatpush.bf16.msra.mxu0 %v571
    %733 = vmatpush.bf16.msra.mxu0 %v568
    %734 = vmatpush.bf16.msra.mxu0 %v565
    %735 = vmatpush.bf16.msra.mxu0 %v562
    %736 = vmatpush.bf16.msra.mxu0 %v559
    %737 = vmatpush.bf16.msra.mxu0 %v556
    %738 = vmatpush.bf16.msra.mxu0 %v553
    %739 = vmatpush.bf16.msra.mxu0 %v550
    %740 = vmatmul.bf16.gmra.mxu0 %v202
    %v741 = vpop.f32.mrf.mxu0
    %v742 = vadd.f32 %v304, %v741
    %v743 = vpop.f32.mrf.mxu0
    %744 = vdwg.mxu0
    %745 = vmatpush.bf16.msra.mxu0 %v595
    %746 = vmatpush.bf16.msra.mxu0 %v592
    %747 = vmatpush.bf16.msra.mxu0 %v589
    %748 = vmatpush.bf16.msra.mxu0 %v586
    %749 = vmatpush.bf16.msra.mxu0 %v583
    %750 = vmatpush.bf16.msra.mxu0 %v580
    %751 = vmatpush.bf16.msra.mxu0 %v577
    %752 = vmatpush.bf16.msra.mxu0 %v574
    %753 = vmatmul.bf16.gmra.mxu0 %v203
    %v754 = vpop.f32.mrf.mxu0
    %v755 = vadd.f32 %v742, %v754
    %v756 = vpop.f32.mrf.mxu0
    %757 = vdwg.mxu0
    %758 = vmatpush.bf16.msra.mxu0 %v619
    %759 = vmatpush.bf16.msra.mxu0 %v616
    %760 = vmatpush.bf16.msra.mxu0 %v613
    %761 = vmatpush.bf16.msra.mxu0 %v610
    %762 = vmatpush.bf16.msra.mxu0 %v607
    %763 = vmatpush.bf16.msra.mxu0 %v604
    %764 = vmatpush.bf16.msra.mxu0 %v601
    %765 = vmatpush.bf16.msra.mxu0 %v598
    %766 = vmatmul.bf16.gmra.mxu0 %v204
    %v767 = vpop.f32.mrf.mxu0
    %v768 = vadd.f32 %v755, %v767
    %v769 = vpop.f32.mrf.mxu0
    %770 = vdwg.mxu0
    %771 = vmatpush.bf16.msra.mxu0 %v572
    %772 = vmatpush.bf16.msra.mxu0 %v569
    %773 = vmatpush.bf16.msra.mxu0 %v566
    %774 = vmatpush.bf16.msra.mxu0 %v563
    %775 = vmatpush.bf16.msra.mxu0 %v560
    %776 = vmatpush.bf16.msra.mxu0 %v557
    %777 = vmatpush.bf16.msra.mxu0 %v554
    %778 = vmatpush.bf16.msra.mxu0 %v551
    %779 = vmatmul.bf16.gmra.mxu0 %v202
    %v780 = vpop.f32.mrf.mxu0
    %v781 = vadd.f32 %v305, %v780
    %v782 = vpop.f32.mrf.mxu0
    %783 = vdwg.mxu0
    %784 = vmatpush.bf16.msra.mxu0 %v596
    %785 = vmatpush.bf16.msra.mxu0 %v593
    %786 = vmatpush.bf16.msra.mxu0 %v590
    %787 = vmatpush.bf16.msra.mxu0 %v587
    %788 = vmatpush.bf16.msra.mxu0 %v584
    %789 = vmatpush.bf16.msra.mxu0 %v581
    %790 = vmatpush.bf16.msra.mxu0 %v578
    %791 = vmatpush.bf16.msra.mxu0 %v575
    %792 = vmatmul.bf16.gmra.mxu0 %v203
    %v793 = vpop.f32.mrf.mxu0
    %v794 = vadd.f32 %v781, %v793
    %v795 = vpop.f32.mrf.mxu0
    %796 = vdwg.mxu0
    %797 = vmatpush.bf16.msra.mxu0 %v620
    %798 = vmatpush.bf16.msra.mxu0 %v617
    %799 = vmatpush.bf16.msra.mxu0 %v614
    %800 = vmatpush.bf16.msra.mxu0 %v611
    %801 = vmatpush.bf16.msra.mxu0 %v608
    %802 = vmatpush.bf16.msra.mxu0 %v605
    %803 = vmatpush.bf16.msra.mxu0 %v602
    %804 = vmatpush.bf16.msra.mxu0 %v599
    %805 = vmatmul.bf16.gmra.mxu0 %v204
    %v806 = vpop.f32.mrf.mxu0
    %v807 = vadd.f32 %v794, %v806
    %v808 = vpop.f32.mrf.mxu0
    %809 = vdwg.mxu0
    %v810 = vmul.f32 %v729, 0.5
    %v811 = vmul.f32 %v768, 0.5
    %v812 = vmul.f32 %v807, 0.5
    %v813 = vtanh.pop %v810
    %v814 = vtanh.pop %v811
    %v815 = vtanh.pop %v812
    %v816 = vmul.f32 %v813, 0.5
    %v817 = vmul.f32 %v814, 0.5
    %v818 = vmul.f32 %v815, 0.5
    %v819 = vadd.f32 %v816, 0.5
    %v820 = vadd.f32 %v817, 0.5
    %v821 = vadd.f32 %v818, 0.5
    %v822 = vpack.c.bf16 %v819, %v819
    %v823 = vpack.c.bf16 %v820, %v820
    %v824 = vpack.c.bf16 %v821, %v821
    %v825 = vld [vmem:[#allocation7] sm:$0xff]
    %v826 = vld [vmem:[#allocation7 + $0x8] sm:$0xf]
    %v827 = vld [vmem:[#allocation7 + $0xc] sm:$0xff]
    %v828 = vld [vmem:[#allocation7 + $0x14] sm:$0xf]
    %v829 = vld [vmem:[#allocation7 + $0x18] sm:$0xff]
    %v830 = vld [vmem:[#allocation7 + $0x20] sm:$0xf]
    %v831 = vld [vmem:[#allocation7 + $0x24] sm:$0xff]
    %v832 = vld [vmem:[#allocation7 + $0x2c] sm:$0xf]
    %v833 = vld [vmem:[#allocation7 + $0x30] sm:$0xff]
    %v834 = vld [vmem:[#allocation7 + $0x38] sm:$0xf]
    %v835 = vld [vmem:[#allocation7 + $0x3c] sm:$0xff]
    %v836 = vld [vmem:[#allocation7 + $0x44] sm:$0xf]
    %v837 = vld [vmem:[#allocation7 + $0x48] sm:$0xff]
    %v838 = vld [vmem:[#allocation7 + $0x50] sm:$0xf]
    %v839 = vld [vmem:[#allocation7 + $0x54] sm:$0xff]
    %v840 = vld [vmem:[#allocation7 + $0x5c] sm:$0xf]
    %v841 = vld [vmem:[#allocation7 + $0x60] sm:$0xff]
    %v842 = vld [vmem:[#allocation7 + $0x68] sm:$0xf]
    %v843 = vld [vmem:[#allocation7 + $0x6c] sm:$0xff]
    %v844 = vld [vmem:[#allocation7 + $0x74] sm:$0xf]
    %v845 = vld [vmem:[#allocation7 + $0x78] sm:$0xff]
    %v846 = vld [vmem:[#allocation7 + $0x80] sm:$0xf]
    %v847 = vld [vmem:[#allocation7 + $0x84] sm:$0xff]
    %v848 = vld [vmem:[#allocation7 + $0x8c] sm:$0xf]
    %v849 = vld [vmem:[#allocation7 + $0x90] sm:$0xff]
    %v850 = vld [vmem:[#allocation7 + $0x98] sm:$0xf]
    %v851 = vld [vmem:[#allocation7 + $0x9c] sm:$0xff]
    %v852 = vld [vmem:[#allocation7 + $0xa4] sm:$0xf]
    %v853 = vld [vmem:[#allocation7 + $0xa8] sm:$0xff]
    %v854 = vld [vmem:[#allocation7 + $0xb0] sm:$0xf]
    %v855 = vld [vmem:[#allocation7 + $0xb4] sm:$0xff]
    %v856 = vld [vmem:[#allocation7 + $0xbc] sm:$0xf]
    %v857 = vld [vmem:[#allocation7 + $0xc0] sm:$0xff]
    %v858 = vld [vmem:[#allocation7 + $0xc8] sm:$0xf]
    %v859 = vld [vmem:[#allocation7 + $0xcc] sm:$0xff]
    %v860 = vld [vmem:[#allocation7 + $0xd4] sm:$0xf]
    %v861 = vld [vmem:[#allocation7 + $0xd8] sm:$0xff]
    %v862 = vld [vmem:[#allocation7 + $0xe0] sm:$0xf]
    %v863 = vld [vmem:[#allocation7 + $0xe4] sm:$0xff]
    %v864 = vld [vmem:[#allocation7 + $0xec] sm:$0xf]
    %v865 = vld [vmem:[#allocation7 + $0xf0] sm:$0xff]
    %v866 = vld [vmem:[#allocation7 + $0xf8] sm:$0xf]
    %v867 = vld [vmem:[#allocation7 + $0xfc] sm:$0xff]
    %v868 = vld [vmem:[#allocation7 + $0x104] sm:$0xf]
    %v869 = vld [vmem:[#allocation7 + $0x108] sm:$0xff]
    %v870 = vld [vmem:[#allocation7 + $0x110] sm:$0xf]
    %v871 = vld [vmem:[#allocation7 + $0x114] sm:$0xff]
    %v872 = vld [vmem:[#allocation7 + $0x11c] sm:$0xf]
    %v873 = vld [vmem:[#allocation7 + $0x120] sm:$0xff]
    %v874 = vld [vmem:[#allocation7 + $0x128] sm:$0xf]
    %v875 = vld [vmem:[#allocation7 + $0x12c] sm:$0xff]
    %v876 = vld [vmem:[#allocation7 + $0x134] sm:$0xf]
    %v877 = vld [vmem:[#allocation7 + $0x138] sm:$0xff]
    %v878 = vld [vmem:[#allocation7 + $0x140] sm:$0xf]
    %v879 = vld [vmem:[#allocation7 + $0x144] sm:$0xff]
    %v880 = vld [vmem:[#allocation7 + $0x14c] sm:$0xf]
    %v881 = vld [vmem:[#allocation7 + $0x150] sm:$0xff]
    %v882 = vld [vmem:[#allocation7 + $0x158] sm:$0xf]
    %v883 = vld [vmem:[#allocation7 + $0x15c] sm:$0xff]
    %v884 = vld [vmem:[#allocation7 + $0x164] sm:$0xf]
    %v885 = vld [vmem:[#allocation7 + $0x168] sm:$0xff]
    %v886 = vld [vmem:[#allocation7 + $0x170] sm:$0xf]
    %v887 = vld [vmem:[#allocation7 + $0x174] sm:$0xff]
    %v888 = vld [vmem:[#allocation7 + $0x17c] sm:$0xf]
    %v889 = vld [vmem:[#allocation7 + $0x180] sm:$0xff]
    %v890 = vld [vmem:[#allocation7 + $0x188] sm:$0xf]
    %v891 = vld [vmem:[#allocation7 + $0x18c] sm:$0xff]
    %v892 = vld [vmem:[#allocation7 + $0x194] sm:$0xf]
    %v893 = vld [vmem:[#allocation7 + $0x198] sm:$0xff]
    %v894 = vld [vmem:[#allocation7 + $0x1a0] sm:$0xf]
    %v895 = vld [vmem:[#allocation7 + $0x1a4] sm:$0xff]
    %v896 = vld [vmem:[#allocation7 + $0x1ac] sm:$0xf]
    %v897 = vld [vmem:[#allocation7 + $0x1b0] sm:$0xff]
    %v898 = vld [vmem:[#allocation7 + $0x1b8] sm:$0xf]
    %v899 = vld [vmem:[#allocation7 + $0x1bc] sm:$0xff]
    %v900 = vld [vmem:[#allocation7 + $0x1c4] sm:$0xf]
    %v901 = vld [vmem:[#allocation7 + $0x1c8] sm:$0xff]
    %v902 = vld [vmem:[#allocation7 + $0x1d0] sm:$0xf]
    %v903 = vld [vmem:[#allocation7 + $0x1d4] sm:$0xff]
    %v904 = vld [vmem:[#allocation7 + $0x1dc] sm:$0xf]
    %v905 = vld [vmem:[#allocation7 + $0x1e0] sm:$0xff]
    %v906 = vld [vmem:[#allocation7 + $0x1e8] sm:$0xf]
    %v907 = vld [vmem:[#allocation7 + $0x1ec] sm:$0xff]
    %v908 = vld [vmem:[#allocation7 + $0x1f4] sm:$0xf]
    %v909 = vld [vmem:[#allocation7 + $0x1f8] sm:$0xff]
    %v910 = vld [vmem:[#allocation7 + $0x200] sm:$0xf]
    %v911 = vld [vmem:[#allocation7 + $0x204] sm:$0xff]
    %v912 = vld [vmem:[#allocation7 + $0x20c] sm:$0xf]
    %v913 = vld [vmem:[#allocation7 + $0x210] sm:$0xff]
    %v914 = vld [vmem:[#allocation7 + $0x218] sm:$0xf]
    %v915 = vld [vmem:[#allocation7 + $0x21c] sm:$0xff]
    %v916 = vld [vmem:[#allocation7 + $0x224] sm:$0xf]
    %v917 = vld [vmem:[#allocation7 + $0x228] sm:$0xff]
    %v918 = vld [vmem:[#allocation7 + $0x230] sm:$0xf]
    %v919 = vld [vmem:[#allocation7 + $0x234] sm:$0xff]
    %v920 = vld [vmem:[#allocation7 + $0x23c] sm:$0xf]
    %v921 = vld [vmem:[%s6] sm:$0x7]
    %v923 = vperm.slane %v921, 0
    %v924 = vperm.slane %v921, 1
    %v925 = vperm.slane %v921, 2
    %v1025 = vunpack.c.l.b16 %v825
    %v1026 = vunpack.c.h.b16 %v825
    %v1027 = vunpack.c.l.b16 %v826
    %v1028 = vunpack.c.l.b16 %v827
    %v1029 = vunpack.c.h.b16 %v827
    %v1030 = vunpack.c.l.b16 %v828
    %v1031 = vunpack.c.l.b16 %v829
    %v1032 = vunpack.c.h.b16 %v829
    %v1033 = vunpack.c.l.b16 %v830
    %v1034 = vunpack.c.l.b16 %v831
    %v1035 = vunpack.c.h.b16 %v831
    %v1036 = vunpack.c.l.b16 %v832
    %v1037 = vunpack.c.l.b16 %v833
    %v1038 = vunpack.c.h.b16 %v833
    %v1039 = vunpack.c.l.b16 %v834
    %v1040 = vunpack.c.l.b16 %v835
    %v1041 = vunpack.c.h.b16 %v835
    %v1042 = vunpack.c.l.b16 %v836
    %v1043 = vunpack.c.l.b16 %v837
    %v1044 = vunpack.c.h.b16 %v837
    %v1045 = vunpack.c.l.b16 %v838
    %v1046 = vunpack.c.l.b16 %v839
    %v1047 = vunpack.c.h.b16 %v839
    %v1048 = vunpack.c.l.b16 %v840
    %v1049 = vunpack.c.l.b16 %v841
    %v1050 = vunpack.c.h.b16 %v841
    %v1051 = vunpack.c.l.b16 %v842
    %v1052 = vunpack.c.l.b16 %v843
    %v1053 = vunpack.c.h.b16 %v843
    %v1054 = vunpack.c.l.b16 %v844
    %v1055 = vunpack.c.l.b16 %v845
    %v1056 = vunpack.c.h.b16 %v845
    %v1057 = vunpack.c.l.b16 %v846
    %v1058 = vunpack.c.l.b16 %v847
    %v1059 = vunpack.c.h.b16 %v847
    %v1060 = vunpack.c.l.b16 %v848
    %v1061 = vunpack.c.l.b16 %v849
    %v1062 = vunpack.c.h.b16 %v849
    %v1063 = vunpack.c.l.b16 %v850
    %v1064 = vunpack.c.l.b16 %v851
    %v1065 = vunpack.c.h.b16 %v851
    %v1066 = vunpack.c.l.b16 %v852
    %v1067 = vunpack.c.l.b16 %v853
    %v1068 = vunpack.c.h.b16 %v853
    %v1069 = vunpack.c.l.b16 %v854
    %v1070 = vunpack.c.l.b16 %v855
    %v1071 = vunpack.c.h.b16 %v855
    %v1072 = vunpack.c.l.b16 %v856
    %v1073 = vunpack.c.l.b16 %v857
    %v1074 = vunpack.c.h.b16 %v857
    %v1075 = vunpack.c.l.b16 %v858
    %v1076 = vunpack.c.l.b16 %v859
    %v1077 = vunpack.c.h.b16 %v859
    %v1078 = vunpack.c.l.b16 %v860
    %v1079 = vunpack.c.l.b16 %v861
    %v1080 = vunpack.c.h.b16 %v861
    %v1081 = vunpack.c.l.b16 %v862
    %v1082 = vunpack.c.l.b16 %v863
    %v1083 = vunpack.c.h.b16 %v863
    %v1084 = vunpack.c.l.b16 %v864
    %v1085 = vunpack.c.l.b16 %v865
    %v1086 = vunpack.c.h.b16 %v865
    %v1087 = vunpack.c.l.b16 %v866
    %v1088 = vunpack.c.l.b16 %v867
    %v1089 = vunpack.c.h.b16 %v867
    %v1090 = vunpack.c.l.b16 %v868
    %v1091 = vunpack.c.l.b16 %v869
    %v1092 = vunpack.c.h.b16 %v869
    %v1093 = vunpack.c.l.b16 %v870
    %v1094 = vunpack.c.l.b16 %v871
    %v1095 = vunpack.c.h.b16 %v871
    %v1096 = vunpack.c.l.b16 %v872
    %v1097 = vunpack.c.l.b16 %v873
    %v1098 = vunpack.c.h.b16 %v873
    %v1099 = vunpack.c.l.b16 %v874
    %v1100 = vunpack.c.l.b16 %v875
    %v1101 = vunpack.c.h.b16 %v875
    %v1102 = vunpack.c.l.b16 %v876
    %v1103 = vunpack.c.l.b16 %v877
    %v1104 = vunpack.c.h.b16 %v877
    %v1105 = vunpack.c.l.b16 %v878
    %v1106 = vunpack.c.l.b16 %v879
    %v1107 = vunpack.c.h.b16 %v879
    %v1108 = vunpack.c.l.b16 %v880
    %v1109 = vunpack.c.l.b16 %v881
    %v1110 = vunpack.c.h.b16 %v881
    %v1111 = vunpack.c.l.b16 %v882
    %v1112 = vunpack.c.l.b16 %v883
    %v1113 = vunpack.c.h.b16 %v883
    %v1114 = vunpack.c.l.b16 %v884
    %v1115 = vunpack.c.l.b16 %v885
    %v1116 = vunpack.c.h.b16 %v885
    %v1117 = vunpack.c.l.b16 %v886
    %v1118 = vunpack.c.l.b16 %v887
    %v1119 = vunpack.c.h.b16 %v887
    %v1120 = vunpack.c.l.b16 %v888
    %v1121 = vunpack.c.l.b16 %v889
    %v1122 = vunpack.c.h.b16 %v889
    %v1123 = vunpack.c.l.b16 %v890
    %v1124 = vunpack.c.l.b16 %v891
    %v1125 = vunpack.c.h.b16 %v891
    %v1126 = vunpack.c.l.b16 %v892
    %v1127 = vunpack.c.l.b16 %v893
    %v1128 = vunpack.c.h.b16 %v893
    %v1129 = vunpack.c.l.b16 %v894
    %v1130 = vunpack.c.l.b16 %v895
    %v1131 = vunpack.c.h.b16 %v895
    %v1132 = vunpack.c.l.b16 %v896
    %v1133 = vunpack.c.l.b16 %v897
    %v1134 = vunpack.c.h.b16 %v897
    %v1135 = vunpack.c.l.b16 %v898
    %v1136 = vunpack.c.l.b16 %v899
    %v1137 = vunpack.c.h.b16 %v899
    %v1138 = vunpack.c.l.b16 %v900
    %v1139 = vunpack.c.l.b16 %v901
    %v1140 = vunpack.c.h.b16 %v901
    %v1141 = vunpack.c.l.b16 %v902
    %v1142 = vunpack.c.l.b16 %v903
    %v1143 = vunpack.c.h.b16 %v903
    %v1144 = vunpack.c.l.b16 %v904
    %v1145 = vunpack.c.l.b16 %v905
    %v1146 = vunpack.c.h.b16 %v905
    %v1147 = vunpack.c.l.b16 %v906
    %v1148 = vunpack.c.l.b16 %v907
    %v1149 = vunpack.c.h.b16 %v907
    %v1150 = vunpack.c.l.b16 %v908
    %v1151 = vunpack.c.l.b16 %v909
    %v1152 = vunpack.c.h.b16 %v909
    %v1153 = vunpack.c.l.b16 %v910
    %v1154 = vunpack.c.l.b16 %v911
    %v1155 = vunpack.c.h.b16 %v911
    %v1156 = vunpack.c.l.b16 %v912
    %v1157 = vunpack.c.l.b16 %v913
    %v1158 = vunpack.c.h.b16 %v913
    %v1159 = vunpack.c.l.b16 %v914
    %v1160 = vunpack.c.l.b16 %v915
    %v1161 = vunpack.c.h.b16 %v915
    %v1162 = vunpack.c.l.b16 %v916
    %v1163 = vunpack.c.l.b16 %v917
    %v1164 = vunpack.c.h.b16 %v917
    %v1165 = vunpack.c.l.b16 %v918
    %v1166 = vunpack.c.l.b16 %v919
    %v1167 = vunpack.c.h.b16 %v919
    %v1168 = vunpack.c.l.b16 %v920
    %v1169 = vpack.c.b16 %v1028, %v1025
    %v1170 = vpack.c.b16 %v1029, %v1026
    %v1171 = vpack.c.b16 %v1030, %v1027
    %v1172 = vpack.c.b16 %v1034, %v1031
    %v1173 = vpack.c.b16 %v1035, %v1032
    %v1174 = vpack.c.b16 %v1036, %v1033
    %v1175 = vpack.c.b16 %v1040, %v1037
    %v1176 = vpack.c.b16 %v1041, %v1038
    %v1177 = vpack.c.b16 %v1042, %v1039
    %v1178 = vpack.c.b16 %v1046, %v1043
    %v1179 = vpack.c.b16 %v1047, %v1044
    %v1180 = vpack.c.b16 %v1048, %v1045
    %v1181 = vpack.c.b16 %v1052, %v1049
    %v1182 = vpack.c.b16 %v1053, %v1050
    %v1183 = vpack.c.b16 %v1054, %v1051
    %v1184 = vpack.c.b16 %v1058, %v1055
    %v1185 = vpack.c.b16 %v1059, %v1056
    %v1186 = vpack.c.b16 %v1060, %v1057
    %v1187 = vpack.c.b16 %v1064, %v1061
    %v1188 = vpack.c.b16 %v1065, %v1062
    %v1189 = vpack.c.b16 %v1066, %v1063
    %v1190 = vpack.c.b16 %v1070, %v1067
    %v1191 = vpack.c.b16 %v1071, %v1068
    %v1192 = vpack.c.b16 %v1072, %v1069
    %v1193 = vpack.c.b16 %v1076, %v1073
    %v1194 = vpack.c.b16 %v1077, %v1074
    %v1195 = vpack.c.b16 %v1078, %v1075
    %v1196 = vpack.c.b16 %v1082, %v1079
    %v1197 = vpack.c.b16 %v1083, %v1080
    %v1198 = vpack.c.b16 %v1084, %v1081
    %v1199 = vpack.c.b16 %v1088, %v1085
    %v1200 = vpack.c.b16 %v1089, %v1086
    %v1201 = vpack.c.b16 %v1090, %v1087
    %v1202 = vpack.c.b16 %v1094, %v1091
    %v1203 = vpack.c.b16 %v1095, %v1092
    %v1204 = vpack.c.b16 %v1096, %v1093
    %v1205 = vpack.c.b16 %v1100, %v1097
    %v1206 = vpack.c.b16 %v1101, %v1098
    %v1207 = vpack.c.b16 %v1102, %v1099
    %v1208 = vpack.c.b16 %v1106, %v1103
    %v1209 = vpack.c.b16 %v1107, %v1104
    %v1210 = vpack.c.b16 %v1108, %v1105
    %v1211 = vpack.c.b16 %v1112, %v1109
    %v1212 = vpack.c.b16 %v1113, %v1110
    %v1213 = vpack.c.b16 %v1114, %v1111
    %v1214 = vpack.c.b16 %v1118, %v1115
    %v1215 = vpack.c.b16 %v1119, %v1116
    %v1216 = vpack.c.b16 %v1120, %v1117
    %v1217 = vpack.c.b16 %v1124, %v1121
    %v1218 = vpack.c.b16 %v1125, %v1122
    %v1219 = vpack.c.b16 %v1126, %v1123
    %v1220 = vpack.c.b16 %v1130, %v1127
    %v1221 = vpack.c.b16 %v1131, %v1128
    %v1222 = vpack.c.b16 %v1132, %v1129
    %v1223 = vpack.c.b16 %v1136, %v1133
    %v1224 = vpack.c.b16 %v1137, %v1134
    %v1225 = vpack.c.b16 %v1138, %v1135
    %v1226 = vpack.c.b16 %v1142, %v1139
    %v1227 = vpack.c.b16 %v1143, %v1140
    %v1228 = vpack.c.b16 %v1144, %v1141
    %v1229 = vpack.c.b16 %v1148, %v1145
    %v1230 = vpack.c.b16 %v1149, %v1146
    %v1231 = vpack.c.b16 %v1150, %v1147
    %v1232 = vpack.c.b16 %v1154, %v1151
    %v1233 = vpack.c.b16 %v1155, %v1152
    %v1234 = vpack.c.b16 %v1156, %v1153
    %v1235 = vpack.c.b16 %v1160, %v1157
    %v1236 = vpack.c.b16 %v1161, %v1158
    %v1237 = vpack.c.b16 %v1162, %v1159
    %v1238 = vpack.c.b16 %v1166, %v1163
    %v1239 = vpack.c.b16 %v1167, %v1164
    %v1240 = vpack.c.b16 %v1168, %v1165
    %1313 = vmatpush.bf16.msra.mxu0 %v1190
    %1314 = vmatpush.bf16.msra.mxu0 %v1187
    %1315 = vmatpush.bf16.msra.mxu0 %v1184
    %1316 = vmatpush.bf16.msra.mxu0 %v1181
    %1317 = vmatpush.bf16.msra.mxu0 %v1178
    %1318 = vmatpush.bf16.msra.mxu0 %v1175
    %1319 = vmatpush.bf16.msra.mxu0 %v1172
    %1320 = vmatpush.bf16.msra.mxu0 %v1169
    %1321 = vmatmul.bf16.gmra.mxu0 %v822
    %v1322 = vpop.f32.mrf.mxu0
    %v1323 = vadd.f32 %v923, %v1322
    %v1324 = vpop.f32.mrf.mxu0
    %1325 = vdwg.mxu0
    %1326 = vmatpush.bf16.msra.mxu0 %v1214
    %1327 = vmatpush.bf16.msra.mxu0 %v1211
    %1328 = vmatpush.bf16.msra.mxu0 %v1208
    %1329 = vmatpush.bf16.msra.mxu0 %v1205
    %1330 = vmatpush.bf16.msra.mxu0 %v1202
    %1331 = vmatpush.bf16.msra.mxu0 %v1199
    %1332 = vmatpush.bf16.msra.mxu0 %v1196
    %1333 = vmatpush.bf16.msra.mxu0 %v1193
    %1334 = vmatmul.bf16.gmra.mxu0 %v823
    %v1335 = vpop.f32.mrf.mxu0
    %v1336 = vadd.f32 %v1323, %v1335
    %v1337 = vpop.f32.mrf.mxu0
    %1338 = vdwg.mxu0
    %1339 = vmatpush.bf16.msra.mxu0 %v1238
    %1340 = vmatpush.bf16.msra.mxu0 %v1235
    %1341 = vmatpush.bf16.msra.mxu0 %v1232
    %1342 = vmatpush.bf16.msra.mxu0 %v1229
    %1343 = vmatpush.bf16.msra.mxu0 %v1226
    %1344 = vmatpush.bf16.msra.mxu0 %v1223
    %1345 = vmatpush.bf16.msra.mxu0 %v1220
    %1346 = vmatpush.bf16.msra.mxu0 %v1217
    %1347 = vmatmul.bf16.gmra.mxu0 %v824
    %v1348 = vpop.f32.mrf.mxu0
    %v1349 = vadd.f32 %v1336, %v1348
    %v1350 = vpop.f32.mrf.mxu0
    %1351 = vdwg.mxu0
    %1352 = vmatpush.bf16.msra.mxu0 %v1191
    %1353 = vmatpush.bf16.msra.mxu0 %v1188
    %1354 = vmatpush.bf16.msra.mxu0 %v1185
    %1355 = vmatpush.bf16.msra.mxu0 %v1182
    %1356 = vmatpush.bf16.msra.mxu0 %v1179
    %1357 = vmatpush.bf16.msra.mxu0 %v1176
    %1358 = vmatpush.bf16.msra.mxu0 %v1173
    %1359 = vmatpush.bf16.msra.mxu0 %v1170
    %1360 = vmatmul.bf16.gmra.mxu0 %v822
    %v1361 = vpop.f32.mrf.mxu0
    %v1362 = vadd.f32 %v924, %v1361
    %v1363 = vpop.f32.mrf.mxu0
    %1364 = vdwg.mxu0
    %1365 = vmatpush.bf16.msra.mxu0 %v1215
    %1366 = vmatpush.bf16.msra.mxu0 %v1212
    %1367 = vmatpush.bf16.msra.mxu0 %v1209
    %1368 = vmatpush.bf16.msra.mxu0 %v1206
    %1369 = vmatpush.bf16.msra.mxu0 %v1203
    %1370 = vmatpush.bf16.msra.mxu0 %v1200
    %1371 = vmatpush.bf16.msra.mxu0 %v1197
    %1372 = vmatpush.bf16.msra.mxu0 %v1194
    %1373 = vmatmul.bf16.gmra.mxu0 %v823
    %v1374 = vpop.f32.mrf.mxu0
    %v1375 = vadd.f32 %v1362, %v1374
    %v1376 = vpop.f32.mrf.mxu0
    %1377 = vdwg.mxu0
    %1378 = vmatpush.bf16.msra.mxu0 %v1239
    %1379 = vmatpush.bf16.msra.mxu0 %v1236
    %1380 = vmatpush.bf16.msra.mxu0 %v1233
    %1381 = vmatpush.bf16.msra.mxu0 %v1230
    %1382 = vmatpush.bf16.msra.mxu0 %v1227
    %1383 = vmatpush.bf16.msra.mxu0 %v1224
    %1384 = vmatpush.bf16.msra.mxu0 %v1221
    %1385 = vmatpush.bf16.msra.mxu0 %v1218
    %1386 = vmatmul.bf16.gmra.mxu0 %v824
    %v1387 = vpop.f32.mrf.mxu0
    %v1388 = vadd.f32 %v1375, %v1387
    %v1389 = vpop.f32.mrf.mxu0
    %1390 = vdwg.mxu0
    %1391 = vmatpush.bf16.msra.mxu0 %v1192
    %1392 = vmatpush.bf16.msra.mxu0 %v1189
    %1393 = vmatpush.bf16.msra.mxu0 %v1186
    %1394 = vmatpush.bf16.msra.mxu0 %v1183
    %1395 = vmatpush.bf16.msra.mxu0 %v1180
    %1396 = vmatpush.bf16.msra.mxu0 %v1177
    %1397 = vmatpush.bf16.msra.mxu0 %v1174
    %1398 = vmatpush.bf16.msra.mxu0 %v1171
    %1399 = vmatmul.bf16.gmra.mxu0 %v822
    %v1400 = vpop.f32.mrf.mxu0
    %v1401 = vadd.f32 %v925, %v1400
    %v1402 = vpop.f32.mrf.mxu0
    %1403 = vdwg.mxu0
    %1404 = vmatpush.bf16.msra.mxu0 %v1216
    %1405 = vmatpush.bf16.msra.mxu0 %v1213
    %1406 = vmatpush.bf16.msra.mxu0 %v1210
    %1407 = vmatpush.bf16.msra.mxu0 %v1207
    %1408 = vmatpush.bf16.msra.mxu0 %v1204
    %1409 = vmatpush.bf16.msra.mxu0 %v1201
    %1410 = vmatpush.bf16.msra.mxu0 %v1198
    %1411 = vmatpush.bf16.msra.mxu0 %v1195
    %1412 = vmatmul.bf16.gmra.mxu0 %v823
    %v1413 = vpop.f32.mrf.mxu0
    %v1414 = vadd.f32 %v1401, %v1413
    %v1415 = vpop.f32.mrf.mxu0
    %1416 = vdwg.mxu0
    %1417 = vmatpush.bf16.msra.mxu0 %v1240
    %1418 = vmatpush.bf16.msra.mxu0 %v1237
    %1419 = vmatpush.bf16.msra.mxu0 %v1234
    %1420 = vmatpush.bf16.msra.mxu0 %v1231
    %1421 = vmatpush.bf16.msra.mxu0 %v1228
    %1422 = vmatpush.bf16.msra.mxu0 %v1225
    %1423 = vmatpush.bf16.msra.mxu0 %v1222
    %1424 = vmatpush.bf16.msra.mxu0 %v1219
    %1425 = vmatmul.bf16.gmra.mxu0 %v824
    %v1426 = vpop.f32.mrf.mxu0
    %v1427 = vadd.f32 %v1414, %v1426
    %v1428 = vpop.f32.mrf.mxu0
    %1429 = vdwg.mxu0
    %v1430 = vmul.f32 %v1349, 0.5
    %v1431 = vmul.f32 %v1388, 0.5
    %v1432 = vmul.f32 %v1427, 0.5
    %v1433 = vtanh.pop %v1430
    %v1434 = vtanh.pop %v1431
    %v1435 = vtanh.pop %v1432
    %v1436 = vmul.f32 %v1433, 0.5
    %v1437 = vmul.f32 %v1434, 0.5
    %v1438 = vmul.f32 %v1435, 0.5
    %v1439 = vadd.f32 %v1436, 0.5
    %v1440 = vadd.f32 %v1437, 0.5
    %v1441 = vadd.f32 %v1438, 0.5
    %v1442 = vpack.c.bf16 %v1439, %v1439
    %v1443 = vpack.c.bf16 %v1440, %v1440
    %v1444 = vpack.c.bf16 %v1441, %v1441
    %v1445 = vld [vmem:[#allocation8] sm:$0xff]
    %v1446 = vld [vmem:[#allocation8 + $0x8] sm:$0xf]
    %v1447 = vld [vmem:[#allocation8 + $0xc] sm:$0xff]
    %v1448 = vld [vmem:[#allocation8 + $0x14] sm:$0xf]
    %v1449 = vld [vmem:[#allocation8 + $0x18] sm:$0xff]
    %v1450 = vld [vmem:[#allocation8 + $0x20] sm:$0xf]
    %v1451 = vld [vmem:[#allocation8 + $0x24] sm:$0xff]
    %v1452 = vld [vmem:[#allocation8 + $0x2c] sm:$0xf]
    %v1453 = vld [vmem:[#allocation8 + $0x30] sm:$0xff]
    %v1454 = vld [vmem:[#allocation8 + $0x38] sm:$0xf]
    %v1455 = vld [vmem:[#allocation8 + $0x3c] sm:$0xff]
    %v1456 = vld [vmem:[#allocation8 + $0x44] sm:$0xf]
    %v1457 = vld [vmem:[#allocation8 + $0x48] sm:$0xff]
    %v1458 = vld [vmem:[#allocation8 + $0x50] sm:$0xf]
    %v1459 = vld [vmem:[#allocation8 + $0x54] sm:$0xff]
    %v1460 = vld [vmem:[#allocation8 + $0x5c] sm:$0xf]
    %v1461 = vld [vmem:[#allocation8 + $0x60] sm:$0xff]
    %v1462 = vld [vmem:[#allocation8 + $0x68] sm:$0xf]
    %v1463 = vld [vmem:[#allocation8 + $0x6c] sm:$0xff]
    %v1464 = vld [vmem:[#allocation8 + $0x74] sm:$0xf]
    %v1465 = vld [vmem:[#allocation8 + $0x78] sm:$0xff]
    %v1466 = vld [vmem:[#allocation8 + $0x80] sm:$0xf]
    %v1467 = vld [vmem:[#allocation8 + $0x84] sm:$0xff]
    %v1468 = vld [vmem:[#allocation8 + $0x8c] sm:$0xf]
    %v1469 = vld [vmem:[#allocation8 + $0x90] sm:$0xff]
    %v1470 = vld [vmem:[#allocation8 + $0x98] sm:$0xf]
    %v1471 = vld [vmem:[#allocation8 + $0x9c] sm:$0xff]
    %v1472 = vld [vmem:[#allocation8 + $0xa4] sm:$0xf]
    %v1473 = vld [vmem:[#allocation8 + $0xa8] sm:$0xff]
    %v1474 = vld [vmem:[#allocation8 + $0xb0] sm:$0xf]
    %v1475 = vld [vmem:[#allocation8 + $0xb4] sm:$0xff]
    %v1476 = vld [vmem:[#allocation8 + $0xbc] sm:$0xf]
    %v1477 = vld [vmem:[#allocation8 + $0xc0] sm:$0xff]
    %v1478 = vld [vmem:[#allocation8 + $0xc8] sm:$0xf]
    %v1479 = vld [vmem:[#allocation8 + $0xcc] sm:$0xff]
    %v1480 = vld [vmem:[#allocation8 + $0xd4] sm:$0xf]
    %v1481 = vld [vmem:[#allocation8 + $0xd8] sm:$0xff]
    %v1482 = vld [vmem:[#allocation8 + $0xe0] sm:$0xf]
    %v1483 = vld [vmem:[#allocation8 + $0xe4] sm:$0xff]
    %v1484 = vld [vmem:[#allocation8 + $0xec] sm:$0xf]
    %v1485 = vld [vmem:[#allocation8 + $0xf0] sm:$0xff]
    %v1486 = vld [vmem:[#allocation8 + $0xf8] sm:$0xf]
    %v1487 = vld [vmem:[#allocation8 + $0xfc] sm:$0xff]
    %v1488 = vld [vmem:[#allocation8 + $0x104] sm:$0xf]
    %v1489 = vld [vmem:[#allocation8 + $0x108] sm:$0xff]
    %v1490 = vld [vmem:[#allocation8 + $0x110] sm:$0xf]
    %v1491 = vld [vmem:[#allocation8 + $0x114] sm:$0xff]
    %v1492 = vld [vmem:[#allocation8 + $0x11c] sm:$0xf]
    %v1493 = vld [vmem:[#allocation8 + $0x120] sm:$0xff]
    %v1494 = vld [vmem:[#allocation8 + $0x128] sm:$0xf]
    %v1495 = vld [vmem:[#allocation8 + $0x12c] sm:$0xff]
    %v1496 = vld [vmem:[#allocation8 + $0x134] sm:$0xf]
    %v1497 = vld [vmem:[#allocation8 + $0x138] sm:$0xff]
    %v1498 = vld [vmem:[#allocation8 + $0x140] sm:$0xf]
    %v1499 = vld [vmem:[#allocation8 + $0x144] sm:$0xff]
    %v1500 = vld [vmem:[#allocation8 + $0x14c] sm:$0xf]
    %v1501 = vld [vmem:[#allocation8 + $0x150] sm:$0xff]
    %v1502 = vld [vmem:[#allocation8 + $0x158] sm:$0xf]
    %v1503 = vld [vmem:[#allocation8 + $0x15c] sm:$0xff]
    %v1504 = vld [vmem:[#allocation8 + $0x164] sm:$0xf]
    %v1505 = vld [vmem:[#allocation8 + $0x168] sm:$0xff]
    %v1506 = vld [vmem:[#allocation8 + $0x170] sm:$0xf]
    %v1507 = vld [vmem:[#allocation8 + $0x174] sm:$0xff]
    %v1508 = vld [vmem:[#allocation8 + $0x17c] sm:$0xf]
    %v1509 = vld [vmem:[#allocation8 + $0x180] sm:$0xff]
    %v1510 = vld [vmem:[#allocation8 + $0x188] sm:$0xf]
    %v1511 = vld [vmem:[#allocation8 + $0x18c] sm:$0xff]
    %v1512 = vld [vmem:[#allocation8 + $0x194] sm:$0xf]
    %v1513 = vld [vmem:[#allocation8 + $0x198] sm:$0xff]
    %v1514 = vld [vmem:[#allocation8 + $0x1a0] sm:$0xf]
    %v1515 = vld [vmem:[#allocation8 + $0x1a4] sm:$0xff]
    %v1516 = vld [vmem:[#allocation8 + $0x1ac] sm:$0xf]
    %v1517 = vld [vmem:[#allocation8 + $0x1b0] sm:$0xff]
    %v1518 = vld [vmem:[#allocation8 + $0x1b8] sm:$0xf]
    %v1519 = vld [vmem:[#allocation8 + $0x1bc] sm:$0xff]
    %v1520 = vld [vmem:[#allocation8 + $0x1c4] sm:$0xf]
    %v1521 = vld [vmem:[#allocation8 + $0x1c8] sm:$0xff]
    %v1522 = vld [vmem:[#allocation8 + $0x1d0] sm:$0xf]
    %v1523 = vld [vmem:[#allocation8 + $0x1d4] sm:$0xff]
    %v1524 = vld [vmem:[#allocation8 + $0x1dc] sm:$0xf]
    %v1525 = vld [vmem:[#allocation8 + $0x1e0] sm:$0xff]
    %v1526 = vld [vmem:[#allocation8 + $0x1e8] sm:$0xf]
    %v1527 = vld [vmem:[#allocation8 + $0x1ec] sm:$0xff]
    %v1528 = vld [vmem:[#allocation8 + $0x1f4] sm:$0xf]
    %v1529 = vld [vmem:[#allocation8 + $0x1f8] sm:$0xff]
    %v1530 = vld [vmem:[#allocation8 + $0x200] sm:$0xf]
    %v1531 = vld [vmem:[#allocation8 + $0x204] sm:$0xff]
    %v1532 = vld [vmem:[#allocation8 + $0x20c] sm:$0xf]
    %v1533 = vld [vmem:[#allocation8 + $0x210] sm:$0xff]
    %v1534 = vld [vmem:[#allocation8 + $0x218] sm:$0xf]
    %v1535 = vld [vmem:[#allocation8 + $0x21c] sm:$0xff]
    %v1536 = vld [vmem:[#allocation8 + $0x224] sm:$0xf]
    %v1537 = vld [vmem:[#allocation8 + $0x228] sm:$0xff]
    %v1538 = vld [vmem:[#allocation8 + $0x230] sm:$0xf]
    %v1539 = vld [vmem:[#allocation8 + $0x234] sm:$0xff]
    %v1540 = vld [vmem:[#allocation8 + $0x23c] sm:$0xf]
    %v1541 = vld [vmem:[%s8] sm:$0x7]
    %v1543 = vperm.slane %v1541, 0
    %v1544 = vperm.slane %v1541, 1
    %v1545 = vperm.slane %v1541, 2
    %v1645 = vunpack.c.l.b16 %v1445
    %v1646 = vunpack.c.h.b16 %v1445
    %v1647 = vunpack.c.l.b16 %v1446
    %v1648 = vunpack.c.l.b16 %v1447
    %v1649 = vunpack.c.h.b16 %v1447
    %v1650 = vunpack.c.l.b16 %v1448
    %v1651 = vunpack.c.l.b16 %v1449
    %v1652 = vunpack.c.h.b16 %v1449
    %v1653 = vunpack.c.l.b16 %v1450
    %v1654 = vunpack.c.l.b16 %v1451
    %v1655 = vunpack.c.h.b16 %v1451
    %v1656 = vunpack.c.l.b16 %v1452
    %v1657 = vunpack.c.l.b16 %v1453
    %v1658 = vunpack.c.h.b16 %v1453
    %v1659 = vunpack.c.l.b16 %v1454
    %v1660 = vunpack.c.l.b16 %v1455
    %v1661 = vunpack.c.h.b16 %v1455
    %v1662 = vunpack.c.l.b16 %v1456
    %v1663 = vunpack.c.l.b16 %v1457
    %v1664 = vunpack.c.h.b16 %v1457
    %v1665 = vunpack.c.l.b16 %v1458
    %v1666 = vunpack.c.l.b16 %v1459
    %v1667 = vunpack.c.h.b16 %v1459
    %v1668 = vunpack.c.l.b16 %v1460
    %v1669 = vunpack.c.l.b16 %v1461
    %v1670 = vunpack.c.h.b16 %v1461
    %v1671 = vunpack.c.l.b16 %v1462
    %v1672 = vunpack.c.l.b16 %v1463
    %v1673 = vunpack.c.h.b16 %v1463
    %v1674 = vunpack.c.l.b16 %v1464
    %v1675 = vunpack.c.l.b16 %v1465
    %v1676 = vunpack.c.h.b16 %v1465
    %v1677 = vunpack.c.l.b16 %v1466
    %v1678 = vunpack.c.l.b16 %v1467
    %v1679 = vunpack.c.h.b16 %v1467
    %v1680 = vunpack.c.l.b16 %v1468
    %v1681 = vunpack.c.l.b16 %v1469
    %v1682 = vunpack.c.h.b16 %v1469
    %v1683 = vunpack.c.l.b16 %v1470
    %v1684 = vunpack.c.l.b16 %v1471
    %v1685 = vunpack.c.h.b16 %v1471
    %v1686 = vunpack.c.l.b16 %v1472
    %v1687 = vunpack.c.l.b16 %v1473
    %v1688 = vunpack.c.h.b16 %v1473
    %v1689 = vunpack.c.l.b16 %v1474
    %v1690 = vunpack.c.l.b16 %v1475
    %v1691 = vunpack.c.h.b16 %v1475
    %v1692 = vunpack.c.l.b16 %v1476
    %v1693 = vunpack.c.l.b16 %v1477
    %v1694 = vunpack.c.h.b16 %v1477
    %v1695 = vunpack.c.l.b16 %v1478
    %v1696 = vunpack.c.l.b16 %v1479
    %v1697 = vunpack.c.h.b16 %v1479
    %v1698 = vunpack.c.l.b16 %v1480
    %v1699 = vunpack.c.l.b16 %v1481
    %v1700 = vunpack.c.h.b16 %v1481
    %v1701 = vunpack.c.l.b16 %v1482
    %v1702 = vunpack.c.l.b16 %v1483
    %v1703 = vunpack.c.h.b16 %v1483
    %v1704 = vunpack.c.l.b16 %v1484
    %v1705 = vunpack.c.l.b16 %v1485
    %v1706 = vunpack.c.h.b16 %v1485
    %v1707 = vunpack.c.l.b16 %v1486
    %v1708 = vunpack.c.l.b16 %v1487
    %v1709 = vunpack.c.h.b16 %v1487
    %v1710 = vunpack.c.l.b16 %v1488
    %v1711 = vunpack.c.l.b16 %v1489
    %v1712 = vunpack.c.h.b16 %v1489
    %v1713 = vunpack.c.l.b16 %v1490
    %v1714 = vunpack.c.l.b16 %v1491
    %v1715 = vunpack.c.h.b16 %v1491
    %v1716 = vunpack.c.l.b16 %v1492
    %v1717 = vunpack.c.l.b16 %v1493
    %v1718 = vunpack.c.h.b16 %v1493
    %v1719 = vunpack.c.l.b16 %v1494
    %v1720 = vunpack.c.l.b16 %v1495
    %v1721 = vunpack.c.h.b16 %v1495
    %v1722 = vunpack.c.l.b16 %v1496
    %v1723 = vunpack.c.l.b16 %v1497
    %v1724 = vunpack.c.h.b16 %v1497
    %v1725 = vunpack.c.l.b16 %v1498
    %v1726 = vunpack.c.l.b16 %v1499
    %v1727 = vunpack.c.h.b16 %v1499
    %v1728 = vunpack.c.l.b16 %v1500
    %v1729 = vunpack.c.l.b16 %v1501
    %v1730 = vunpack.c.h.b16 %v1501
    %v1731 = vunpack.c.l.b16 %v1502
    %v1732 = vunpack.c.l.b16 %v1503
    %v1733 = vunpack.c.h.b16 %v1503
    %v1734 = vunpack.c.l.b16 %v1504
    %v1735 = vunpack.c.l.b16 %v1505
    %v1736 = vunpack.c.h.b16 %v1505
    %v1737 = vunpack.c.l.b16 %v1506
    %v1738 = vunpack.c.l.b16 %v1507
    %v1739 = vunpack.c.h.b16 %v1507
    %v1740 = vunpack.c.l.b16 %v1508
    %v1741 = vunpack.c.l.b16 %v1509
    %v1742 = vunpack.c.h.b16 %v1509
    %v1743 = vunpack.c.l.b16 %v1510
    %v1744 = vunpack.c.l.b16 %v1511
    %v1745 = vunpack.c.h.b16 %v1511
    %v1746 = vunpack.c.l.b16 %v1512
    %v1747 = vunpack.c.l.b16 %v1513
    %v1748 = vunpack.c.h.b16 %v1513
    %v1749 = vunpack.c.l.b16 %v1514
    %v1750 = vunpack.c.l.b16 %v1515
    %v1751 = vunpack.c.h.b16 %v1515
    %v1752 = vunpack.c.l.b16 %v1516
    %v1753 = vunpack.c.l.b16 %v1517
    %v1754 = vunpack.c.h.b16 %v1517
    %v1755 = vunpack.c.l.b16 %v1518
    %v1756 = vunpack.c.l.b16 %v1519
    %v1757 = vunpack.c.h.b16 %v1519
    %v1758 = vunpack.c.l.b16 %v1520
    %v1759 = vunpack.c.l.b16 %v1521
    %v1760 = vunpack.c.h.b16 %v1521
    %v1761 = vunpack.c.l.b16 %v1522
    %v1762 = vunpack.c.l.b16 %v1523
    %v1763 = vunpack.c.h.b16 %v1523
    %v1764 = vunpack.c.l.b16 %v1524
    %v1765 = vunpack.c.l.b16 %v1525
    %v1766 = vunpack.c.h.b16 %v1525
    %v1767 = vunpack.c.l.b16 %v1526
    %v1768 = vunpack.c.l.b16 %v1527
    %v1769 = vunpack.c.h.b16 %v1527
    %v1770 = vunpack.c.l.b16 %v1528
    %v1771 = vunpack.c.l.b16 %v1529
    %v1772 = vunpack.c.h.b16 %v1529
    %v1773 = vunpack.c.l.b16 %v1530
    %v1774 = vunpack.c.l.b16 %v1531
    %v1775 = vunpack.c.h.b16 %v1531
    %v1776 = vunpack.c.l.b16 %v1532
    %v1777 = vunpack.c.l.b16 %v1533
    %v1778 = vunpack.c.h.b16 %v1533
    %v1779 = vunpack.c.l.b16 %v1534
    %v1780 = vunpack.c.l.b16 %v1535
    %v1781 = vunpack.c.h.b16 %v1535
    %v1782 = vunpack.c.l.b16 %v1536
    %v1783 = vunpack.c.l.b16 %v1537
    %v1784 = vunpack.c.h.b16 %v1537
    %v1785 = vunpack.c.l.b16 %v1538
    %v1786 = vunpack.c.l.b16 %v1539
    %v1787 = vunpack.c.h.b16 %v1539
    %v1788 = vunpack.c.l.b16 %v1540
    %v1789 = vpack.c.b16 %v1648, %v1645
    %v1790 = vpack.c.b16 %v1649, %v1646
    %v1791 = vpack.c.b16 %v1650, %v1647
    %v1792 = vpack.c.b16 %v1654, %v1651
    %v1793 = vpack.c.b16 %v1655, %v1652
    %v1794 = vpack.c.b16 %v1656, %v1653
    %v1795 = vpack.c.b16 %v1660, %v1657
    %v1796 = vpack.c.b16 %v1661, %v1658
    %v1797 = vpack.c.b16 %v1662, %v1659
    %v1798 = vpack.c.b16 %v1666, %v1663
    %v1799 = vpack.c.b16 %v1667, %v1664
    %v1800 = vpack.c.b16 %v1668, %v1665
    %v1801 = vpack.c.b16 %v1672, %v1669
    %v1802 = vpack.c.b16 %v1673, %v1670
    %v1803 = vpack.c.b16 %v1674, %v1671
    %v1804 = vpack.c.b16 %v1678, %v1675
    %v1805 = vpack.c.b16 %v1679, %v1676
    %v1806 = vpack.c.b16 %v1680, %v1677
    %v1807 = vpack.c.b16 %v1684, %v1681
    %v1808 = vpack.c.b16 %v1685, %v1682
    %v1809 = vpack.c.b16 %v1686, %v1683
    %v1810 = vpack.c.b16 %v1690, %v1687
    %v1811 = vpack.c.b16 %v1691, %v1688
    %v1812 = vpack.c.b16 %v1692, %v1689
    %v1813 = vpack.c.b16 %v1696, %v1693
    %v1814 = vpack.c.b16 %v1697, %v1694
    %v1815 = vpack.c.b16 %v1698, %v1695
    %v1816 = vpack.c.b16 %v1702, %v1699
    %v1817 = vpack.c.b16 %v1703, %v1700
    %v1818 = vpack.c.b16 %v1704, %v1701
    %v1819 = vpack.c.b16 %v1708, %v1705
    %v1820 = vpack.c.b16 %v1709, %v1706
    %v1821 = vpack.c.b16 %v1710, %v1707
    %v1822 = vpack.c.b16 %v1714, %v1711
    %v1823 = vpack.c.b16 %v1715, %v1712
    %v1824 = vpack.c.b16 %v1716, %v1713
    %v1825 = vpack.c.b16 %v1720, %v1717
    %v1826 = vpack.c.b16 %v1721, %v1718
    %v1827 = vpack.c.b16 %v1722, %v1719
    %v1828 = vpack.c.b16 %v1726, %v1723
    %v1829 = vpack.c.b16 %v1727, %v1724
    %v1830 = vpack.c.b16 %v1728, %v1725
    %v1831 = vpack.c.b16 %v1732, %v1729
    %v1832 = vpack.c.b16 %v1733, %v1730
    %v1833 = vpack.c.b16 %v1734, %v1731
    %v1834 = vpack.c.b16 %v1738, %v1735
    %v1835 = vpack.c.b16 %v1739, %v1736
    %v1836 = vpack.c.b16 %v1740, %v1737
    %v1837 = vpack.c.b16 %v1744, %v1741
    %v1838 = vpack.c.b16 %v1745, %v1742
    %v1839 = vpack.c.b16 %v1746, %v1743
    %v1840 = vpack.c.b16 %v1750, %v1747
    %v1841 = vpack.c.b16 %v1751, %v1748
    %v1842 = vpack.c.b16 %v1752, %v1749
    %v1843 = vpack.c.b16 %v1756, %v1753
    %v1844 = vpack.c.b16 %v1757, %v1754
    %v1845 = vpack.c.b16 %v1758, %v1755
    %v1846 = vpack.c.b16 %v1762, %v1759
    %v1847 = vpack.c.b16 %v1763, %v1760
    %v1848 = vpack.c.b16 %v1764, %v1761
    %v1849 = vpack.c.b16 %v1768, %v1765
    %v1850 = vpack.c.b16 %v1769, %v1766
    %v1851 = vpack.c.b16 %v1770, %v1767
    %v1852 = vpack.c.b16 %v1774, %v1771
    %v1853 = vpack.c.b16 %v1775, %v1772
    %v1854 = vpack.c.b16 %v1776, %v1773
    %v1855 = vpack.c.b16 %v1780, %v1777
    %v1856 = vpack.c.b16 %v1781, %v1778
    %v1857 = vpack.c.b16 %v1782, %v1779
    %v1858 = vpack.c.b16 %v1786, %v1783
    %v1859 = vpack.c.b16 %v1787, %v1784
    %v1860 = vpack.c.b16 %v1788, %v1785
    %1933 = vmatpush.bf16.msra.mxu0 %v1810
    %1934 = vmatpush.bf16.msra.mxu0 %v1807
    %1935 = vmatpush.bf16.msra.mxu0 %v1804
    %1936 = vmatpush.bf16.msra.mxu0 %v1801
    %1937 = vmatpush.bf16.msra.mxu0 %v1798
    %1938 = vmatpush.bf16.msra.mxu0 %v1795
    %1939 = vmatpush.bf16.msra.mxu0 %v1792
    %1940 = vmatpush.bf16.msra.mxu0 %v1789
    %1941 = vmatmul.bf16.gmra.mxu0 %v1442
    %v1942 = vpop.f32.mrf.mxu0
    %v1943 = vadd.f32 %v1543, %v1942
    %v1944 = vpop.f32.mrf.mxu0
    %1945 = vdwg.mxu0
    %1946 = vmatpush.bf16.msra.mxu0 %v1834
    %1947 = vmatpush.bf16.msra.mxu0 %v1831
    %1948 = vmatpush.bf16.msra.mxu0 %v1828
    %1949 = vmatpush.bf16.msra.mxu0 %v1825
    %1950 = vmatpush.bf16.msra.mxu0 %v1822
    %1951 = vmatpush.bf16.msra.mxu0 %v1819
    %1952 = vmatpush.bf16.msra.mxu0 %v1816
    %1953 = vmatpush.bf16.msra.mxu0 %v1813
    %1954 = vmatmul.bf16.gmra.mxu0 %v1443
    %v1955 = vpop.f32.mrf.mxu0
    %v1956 = vadd.f32 %v1943, %v1955
    %v1957 = vpop.f32.mrf.mxu0
    %1958 = vdwg.mxu0
    %1959 = vmatpush.bf16.msra.mxu0 %v1858
    %1960 = vmatpush.bf16.msra.mxu0 %v1855
    %1961 = vmatpush.bf16.msra.mxu0 %v1852
    %1962 = vmatpush.bf16.msra.mxu0 %v1849
    %1963 = vmatpush.bf16.msra.mxu0 %v1846
    %1964 = vmatpush.bf16.msra.mxu0 %v1843
    %1965 = vmatpush.bf16.msra.mxu0 %v1840
    %1966 = vmatpush.bf16.msra.mxu0 %v1837
    %1967 = vmatmul.bf16.gmra.mxu0 %v1444
    %v1968 = vpop.f32.mrf.mxu0
    %v1969 = vadd.f32 %v1956, %v1968
    %v1970 = vpop.f32.mrf.mxu0
    %1971 = vdwg.mxu0
    %1972 = vmatpush.bf16.msra.mxu0 %v1811
    %1973 = vmatpush.bf16.msra.mxu0 %v1808
    %1974 = vmatpush.bf16.msra.mxu0 %v1805
    %1975 = vmatpush.bf16.msra.mxu0 %v1802
    %1976 = vmatpush.bf16.msra.mxu0 %v1799
    %1977 = vmatpush.bf16.msra.mxu0 %v1796
    %1978 = vmatpush.bf16.msra.mxu0 %v1793
    %1979 = vmatpush.bf16.msra.mxu0 %v1790
    %1980 = vmatmul.bf16.gmra.mxu0 %v1442
    %v1981 = vpop.f32.mrf.mxu0
    %v1982 = vadd.f32 %v1544, %v1981
    %v1983 = vpop.f32.mrf.mxu0
    %1984 = vdwg.mxu0
    %1985 = vmatpush.bf16.msra.mxu0 %v1835
    %1986 = vmatpush.bf16.msra.mxu0 %v1832
    %1987 = vmatpush.bf16.msra.mxu0 %v1829
    %1988 = vmatpush.bf16.msra.mxu0 %v1826
    %1989 = vmatpush.bf16.msra.mxu0 %v1823
    %1990 = vmatpush.bf16.msra.mxu0 %v1820
    %1991 = vmatpush.bf16.msra.mxu0 %v1817
    %1992 = vmatpush.bf16.msra.mxu0 %v1814
    %1993 = vmatmul.bf16.gmra.mxu0 %v1443
    %v1994 = vpop.f32.mrf.mxu0
    %v1995 = vadd.f32 %v1982, %v1994
    %v1996 = vpop.f32.mrf.mxu0
    %1997 = vdwg.mxu0
    %1998 = vmatpush.bf16.msra.mxu0 %v1859
    %1999 = vmatpush.bf16.msra.mxu0 %v1856
    %2000 = vmatpush.bf16.msra.mxu0 %v1853
    %2001 = vmatpush.bf16.msra.mxu0 %v1850
    %2002 = vmatpush.bf16.msra.mxu0 %v1847
    %2003 = vmatpush.bf16.msra.mxu0 %v1844
    %2004 = vmatpush.bf16.msra.mxu0 %v1841
    %2005 = vmatpush.bf16.msra.mxu0 %v1838
    %2006 = vmatmul.bf16.gmra.mxu0 %v1444
    %v2007 = vpop.f32.mrf.mxu0
    %v2008 = vadd.f32 %v1995, %v2007
    %v2009 = vpop.f32.mrf.mxu0
    %2010 = vdwg.mxu0
    %2011 = vmatpush.bf16.msra.mxu0 %v1812
    %2012 = vmatpush.bf16.msra.mxu0 %v1809
    %2013 = vmatpush.bf16.msra.mxu0 %v1806
    %2014 = vmatpush.bf16.msra.mxu0 %v1803
    %2015 = vmatpush.bf16.msra.mxu0 %v1800
    %2016 = vmatpush.bf16.msra.mxu0 %v1797
    %2017 = vmatpush.bf16.msra.mxu0 %v1794
    %2018 = vmatpush.bf16.msra.mxu0 %v1791
    %2019 = vmatmul.bf16.gmra.mxu0 %v1442
    %v2020 = vpop.f32.mrf.mxu0
    %v2021 = vadd.f32 %v1545, %v2020
    %v2022 = vpop.f32.mrf.mxu0
    %2023 = vdwg.mxu0
    %2024 = vmatpush.bf16.msra.mxu0 %v1836
    %2025 = vmatpush.bf16.msra.mxu0 %v1833
    %2026 = vmatpush.bf16.msra.mxu0 %v1830
    %2027 = vmatpush.bf16.msra.mxu0 %v1827
    %2028 = vmatpush.bf16.msra.mxu0 %v1824
    %2029 = vmatpush.bf16.msra.mxu0 %v1821
    %2030 = vmatpush.bf16.msra.mxu0 %v1818
    %2031 = vmatpush.bf16.msra.mxu0 %v1815
    %2032 = vmatmul.bf16.gmra.mxu0 %v1443
    %v2033 = vpop.f32.mrf.mxu0
    %v2034 = vadd.f32 %v2021, %v2033
    %v2035 = vpop.f32.mrf.mxu0
    %2036 = vdwg.mxu0
    %2037 = vmatpush.bf16.msra.mxu0 %v1860
    %2038 = vmatpush.bf16.msra.mxu0 %v1857
    %2039 = vmatpush.bf16.msra.mxu0 %v1854
    %2040 = vmatpush.bf16.msra.mxu0 %v1851
    %2041 = vmatpush.bf16.msra.mxu0 %v1848
    %2042 = vmatpush.bf16.msra.mxu0 %v1845
    %2043 = vmatpush.bf16.msra.mxu0 %v1842
    %2044 = vmatpush.bf16.msra.mxu0 %v1839
    %2045 = vmatmul.bf16.gmra.mxu0 %v1444
    %v2046 = vpop.f32.mrf.mxu0
    %v2047 = vadd.f32 %v2034, %v2046
    %v2048 = vpop.f32.mrf.mxu0
    %2049 = vdwg.mxu0
    %v2050 = vmul.f32 %v1969, 0.5
    %v2051 = vmul.f32 %v2008, 0.5
    %v2052 = vmul.f32 %v2047, 0.5
    %v2053 = vtanh.pop %v2050
    %v2054 = vtanh.pop %v2051
    %v2055 = vtanh.pop %v2052
    %v2056 = vmul.f32 %v2053, 0.5
    %v2057 = vmul.f32 %v2054, 0.5
    %v2058 = vmul.f32 %v2055, 0.5
    %v2059 = vadd.f32 %v2056, 0.5
    %v2060 = vadd.f32 %v2057, 0.5
    %v2061 = vadd.f32 %v2058, 0.5
    %v2062 = vpack.c.bf16 %v2059, %v2059
    %v2063 = vpack.c.bf16 %v2060, %v2060
    %v2064 = vpack.c.bf16 %v2061, %v2061
    %v2065 = vld [vmem:[#allocation10] sm:$0xf]
    %v2066 = vld [vmem:[#allocation10 + $0x4] sm:$0xf]
    %v2067 = vld [vmem:[#allocation10 + $0x8] sm:$0xf]
    %v2068 = vld [vmem:[#allocation10 + $0xc] sm:$0xf]
    %v2069 = vld [vmem:[#allocation10 + $0x10] sm:$0xf]
    %v2070 = vld [vmem:[#allocation10 + $0x14] sm:$0xf]
    %v2071 = vld [vmem:[#allocation10 + $0x18] sm:$0xf]
    %v2072 = vld [vmem:[#allocation10 + $0x1c] sm:$0xf]
    %v2073 = vld [vmem:[#allocation10 + $0x20] sm:$0xf]
    %v2074 = vld [vmem:[#allocation10 + $0x24] sm:$0xf]
    %v2075 = vld [vmem:[#allocation10 + $0x28] sm:$0xf]
    %v2076 = vld [vmem:[#allocation10 + $0x2c] sm:$0xf]
    %v2077 = vld [vmem:[#allocation10 + $0x30] sm:$0xf]
    %v2078 = vld [vmem:[#allocation10 + $0x34] sm:$0xf]
    %v2079 = vld [vmem:[#allocation10 + $0x38] sm:$0xf]
    %v2080 = vld [vmem:[#allocation10 + $0x3c] sm:$0xf]
    %v2081 = vld [vmem:[#allocation10 + $0x40] sm:$0xf]
    %v2082 = vld [vmem:[#allocation10 + $0x44] sm:$0xf]
    %v2083 = vld [vmem:[#allocation10 + $0x48] sm:$0xf]
    %v2084 = vld [vmem:[#allocation10 + $0x4c] sm:$0xf]
    %v2085 = vld [vmem:[#allocation10 + $0x50] sm:$0xf]
    %v2086 = vld [vmem:[#allocation10 + $0x54] sm:$0xf]
    %v2087 = vld [vmem:[#allocation10 + $0x58] sm:$0xf]
    %v2088 = vld [vmem:[#allocation10 + $0x5c] sm:$0xf]
    %v2089 = vld [vmem:[#allocation10 + $0x60] sm:$0xf]
    %v2090 = vld [vmem:[#allocation10 + $0x64] sm:$0xf]
    %v2091 = vld [vmem:[#allocation10 + $0x68] sm:$0xf]
    %v2092 = vld [vmem:[#allocation10 + $0x6c] sm:$0xf]
    %v2093 = vld [vmem:[#allocation10 + $0x70] sm:$0xf]
    %v2094 = vld [vmem:[#allocation10 + $0x74] sm:$0xf]
    %v2095 = vld [vmem:[#allocation10 + $0x78] sm:$0xf]
    %v2096 = vld [vmem:[#allocation10 + $0x7c] sm:$0xf]
    %v2097 = vld [vmem:[#allocation10 + $0x80] sm:$0xf]
    %v2098 = vld [vmem:[#allocation10 + $0x84] sm:$0xf]
    %v2099 = vld [vmem:[#allocation10 + $0x88] sm:$0xf]
    %v2100 = vld [vmem:[#allocation10 + $0x8c] sm:$0xf]
    %v2101 = vld [vmem:[#allocation10 + $0x90] sm:$0xf]
    %v2102 = vld [vmem:[#allocation10 + $0x94] sm:$0xf]
    %v2103 = vld [vmem:[#allocation10 + $0x98] sm:$0xf]
    %v2104 = vld [vmem:[#allocation10 + $0x9c] sm:$0xf]
    %v2105 = vld [vmem:[#allocation10 + $0xa0] sm:$0xf]
    %v2106 = vld [vmem:[#allocation10 + $0xa4] sm:$0xf]
    %v2107 = vld [vmem:[#allocation10 + $0xa8] sm:$0xf]
    %v2108 = vld [vmem:[#allocation10 + $0xac] sm:$0xf]
    %v2109 = vld [vmem:[#allocation10 + $0xb0] sm:$0xf]
    %v2110 = vld [vmem:[#allocation10 + $0xb4] sm:$0xf]
    %v2111 = vld [vmem:[#allocation10 + $0xb8] sm:$0xf]
    %v2112 = vld [vmem:[#allocation10 + $0xbc] sm:$0xf]
    %v2113 = vld [vmem:[%s10] sm:$0x1]
    %v2115 = vperm.slane %v2113, 0
    %v2165 = vunpack.c.l.b16 %v2065
    %v2166 = vunpack.c.l.b16 %v2066
    %v2167 = vunpack.c.l.b16 %v2067
    %v2168 = vunpack.c.l.b16 %v2068
    %v2169 = vunpack.c.l.b16 %v2069
    %v2170 = vunpack.c.l.b16 %v2070
    %v2171 = vunpack.c.l.b16 %v2071
    %v2172 = vunpack.c.l.b16 %v2072
    %v2173 = vunpack.c.l.b16 %v2073
    %v2174 = vunpack.c.l.b16 %v2074
    %v2175 = vunpack.c.l.b16 %v2075
    %v2176 = vunpack.c.l.b16 %v2076
    %v2177 = vunpack.c.l.b16 %v2077
    %v2178 = vunpack.c.l.b16 %v2078
    %v2179 = vunpack.c.l.b16 %v2079
    %v2180 = vunpack.c.l.b16 %v2080
    %v2181 = vunpack.c.l.b16 %v2081
    %v2182 = vunpack.c.l.b16 %v2082
    %v2183 = vunpack.c.l.b16 %v2083
    %v2184 = vunpack.c.l.b16 %v2084
    %v2185 = vunpack.c.l.b16 %v2085
    %v2186 = vunpack.c.l.b16 %v2086
    %v2187 = vunpack.c.l.b16 %v2087
    %v2188 = vunpack.c.l.b16 %v2088
    %v2189 = vunpack.c.l.b16 %v2089
    %v2190 = vunpack.c.l.b16 %v2090
    %v2191 = vunpack.c.l.b16 %v2091
    %v2192 = vunpack.c.l.b16 %v2092
    %v2193 = vunpack.c.l.b16 %v2093
    %v2194 = vunpack.c.l.b16 %v2094
    %v2195 = vunpack.c.l.b16 %v2095
    %v2196 = vunpack.c.l.b16 %v2096
    %v2197 = vunpack.c.l.b16 %v2097
    %v2198 = vunpack.c.l.b16 %v2098
    %v2199 = vunpack.c.l.b16 %v2099
    %v2200 = vunpack.c.l.b16 %v2100
    %v2201 = vunpack.c.l.b16 %v2101
    %v2202 = vunpack.c.l.b16 %v2102
    %v2203 = vunpack.c.l.b16 %v2103
    %v2204 = vunpack.c.l.b16 %v2104
    %v2205 = vunpack.c.l.b16 %v2105
    %v2206 = vunpack.c.l.b16 %v2106
    %v2207 = vunpack.c.l.b16 %v2107
    %v2208 = vunpack.c.l.b16 %v2108
    %v2209 = vunpack.c.l.b16 %v2109
    %v2210 = vunpack.c.l.b16 %v2110
    %v2211 = vunpack.c.l.b16 %v2111
    %v2212 = vunpack.c.l.b16 %v2112
    %v2213 = vpack.c.b16 %v2166, %v2165
    %v2214 = vpack.c.b16 %v2168, %v2167
    %v2215 = vpack.c.b16 %v2170, %v2169
    %v2216 = vpack.c.b16 %v2172, %v2171
    %v2217 = vpack.c.b16 %v2174, %v2173
    %v2218 = vpack.c.b16 %v2176, %v2175
    %v2219 = vpack.c.b16 %v2178, %v2177
    %v2220 = vpack.c.b16 %v2180, %v2179
    %v2221 = vpack.c.b16 %v2182, %v2181
    %v2222 = vpack.c.b16 %v2184, %v2183
    %v2223 = vpack.c.b16 %v2186, %v2185
    %v2224 = vpack.c.b16 %v2188, %v2187
    %v2225 = vpack.c.b16 %v2190, %v2189
    %v2226 = vpack.c.b16 %v2192, %v2191
    %v2227 = vpack.c.b16 %v2194, %v2193
    %v2228 = vpack.c.b16 %v2196, %v2195
    %v2229 = vpack.c.b16 %v2198, %v2197
    %v2230 = vpack.c.b16 %v2200, %v2199
    %v2231 = vpack.c.b16 %v2202, %v2201
    %v2232 = vpack.c.b16 %v2204, %v2203
    %v2233 = vpack.c.b16 %v2206, %v2205
    %v2234 = vpack.c.b16 %v2208, %v2207
    %v2235 = vpack.c.b16 %v2210, %v2209
    %v2236 = vpack.c.b16 %v2212, %v2211
    %2261 = vmatpush.bf16.msra.mxu0 %v2220
    %2262 = vmatpush.bf16.msra.mxu0 %v2219
    %2263 = vmatpush.bf16.msra.mxu0 %v2218
    %2264 = vmatpush.bf16.msra.mxu0 %v2217
    %2265 = vmatpush.bf16.msra.mxu0 %v2216
    %2266 = vmatpush.bf16.msra.mxu0 %v2215
    %2267 = vmatpush.bf16.msra.mxu0 %v2214
    %2268 = vmatpush.bf16.msra.mxu0 %v2213
    %2269 = vmatmul.bf16.gmra.mxu0 %v2062
    %v2270 = vpop.f32.mrf.mxu0
    %v2271 = vadd.f32 %v2115, %v2270
    %v2272 = vpop.f32.mrf.mxu0
    %2273 = vdwg.mxu0
    %2274 = vmatpush.bf16.msra.mxu0 %v2228
    %2275 = vmatpush.bf16.msra.mxu0 %v2227
    %2276 = vmatpush.bf16.msra.mxu0 %v2226
    %2277 = vmatpush.bf16.msra.mxu0 %v2225
    %2278 = vmatpush.bf16.msra.mxu0 %v2224
    %2279 = vmatpush.bf16.msra.mxu0 %v2223
    %2280 = vmatpush.bf16.msra.mxu0 %v2222
    %2281 = vmatpush.bf16.msra.mxu0 %v2221
    %2282 = vmatmul.bf16.gmra.mxu0 %v2063
    %v2283 = vpop.f32.mrf.mxu0
    %v2284 = vadd.f32 %v2271, %v2283
    %v2285 = vpop.f32.mrf.mxu0
    %2286 = vdwg.mxu0
    %2287 = vmatpush.bf16.msra.mxu0 %v2236
    %2288 = vmatpush.bf16.msra.mxu0 %v2235
    %2289 = vmatpush.bf16.msra.mxu0 %v2234
    %2290 = vmatpush.bf16.msra.mxu0 %v2233
    %2291 = vmatpush.bf16.msra.mxu0 %v2232
    %2292 = vmatpush.bf16.msra.mxu0 %v2231
    %2293 = vmatpush.bf16.msra.mxu0 %v2230
    %2294 = vmatpush.bf16.msra.mxu0 %v2229
    %2295 = vmatmul.bf16.gmra.mxu0 %v2064
    %v2296 = vpop.f32.mrf.mxu0
    %v2297 = vadd.f32 %v2284, %v2296
    %v2298 = vpop.f32.mrf.mxu0
    %2299 = vdwg.mxu0
    %2300 = vst [vmem:[#allocation11] sm:$0xff] %v2297
    // Predicated region
    $region66: #{autoencoder_forward.1} parent=1 // pred_check
      _
    $region67: #{autoencoder_forward.1} parent=1 // pred_check_branch
      %2302 = sbr.rel (0) target = $region69
    $region68: #{autoencoder_forward.1} parent=1 // pred_region
      %2304 = vsyncadd [#allocation4], 0
      %s2306 = sshll.u32 [#allocation11], 4
      %s2307 = int_to_ptr.vmem [resolvable:$true] %s2306
      %s2308 = sshll.u32 %s11, 4
      %s2309 = int_to_ptr.hbm [resolvable:$true] %s2308
      %2311 = dma.vmem_to_hbm [thread:$0]  %s2307, 128, %s2309, [#allocation4]
    $region69: #{autoencoder_forward.1} parent=1 // pred_fallthru
      _
    // Predicated region
    $region70: #{autoencoder_forward.1} parent=1 // pred_check
      _
    $region71: #{autoencoder_forward.1} parent=1 // pred_check_branch
      %2313 = sbr.rel (0) target = $region73
    $region72: #{autoencoder_forward.1} parent=1 // pred_region
      %2315 = dma.done [#allocation4], 128
    $region73: #{autoencoder_forward.1} parent=1 // pred_fallthru
      _
    %2316 = vsyncpa [#allocation3], 1
    %2317 = vsyncpa [#allocation6], 1
    %2318 = vsyncpa [#allocation9], 1
    %2319 = vsyncpa [#allocation4], 1

</llo_original>
